<compile_context>
chip_gen: v6e
topology: v6e:2x2x1
jax: 0.10.0
libtpu: 0.0.40
codegen_flags: <defaults>
</compile_context>

<pallas_src>
import functools

import jax
import jax.numpy as jnp
from jax.experimental import pallas as pl
from jax.experimental.pallas import tpu as pltpu

# Demo shapes consistent with the module (reduce_rate=16 needs C >= 16;
# C chosen lane-width friendly, H*W a multiple of 128 for lane-dense I/O).
N, C, H, W = 8, 128, 16, 16
REDUCE = 16
CR = C // REDUCE          # squeezed channels (= 8)
HW = H * W                # 256


def _se_kernel(x_ref, w1_ref, w2_ref, o_ref, *, b_tile, hw):
    """One block of `b_tile` batch samples per grid step.

    x_ref : (b_tile, C, HW)  input samples
    w1_ref: (CR, C)          fc1.weight (PyTorch (out, in) layout)
    w2_ref: (C, CR)          fc2.weight (PyTorch (out, in) layout)
    o_ref : (b_tile, C, HW)  gated output samples
    """
    # ---- squeeze: per-sample global average pool over H*W (lane reduction).
    # Build pooled as (C, b_tile): channels on sublanes, samples on lanes.
    inv_hw = jnp.float32(1.0 / hw)
    cols = [jnp.sum(x_ref[b], axis=-1, keepdims=True) * inv_hw
            for b in range(b_tile)]                                   # each (C, 1)
    pooled = jnp.concatenate(cols, axis=-1) if b_tile > 1 else cols[0]  # (C, b_tile)

    # ---- excitation: fc1 -> relu -> fc2 -> sigmoid --------------------------
    # One MXU push per layer for the whole block (batched matvec).
    h = jnp.dot(w1_ref[...], pooled,
                preferred_element_type=jnp.float32)                   # (CR, b_tile)
    h = jnp.maximum(h, 0.0)                                           # ReLU
    g = jnp.dot(w2_ref[...], h,
                preferred_element_type=jnp.float32)                   # (C, b_tile)
    gate = jax.nn.sigmoid(g)                                          # (C, b_tile)

    # ---- scale: channel-wise gate applied per sample ------------------------
    # Re-read the ref at the multiply (no giant live value across the FCs);
    # the (C, 1) gate column broadcasts over (C, HW) with no relayout.
    for b in range(b_tile):
        gate_b = gate[:, b:b + 1]                                     # (C, 1)
        o_ref[b] = (x_ref[b] * gate_b).astype(o_ref.dtype)            # (C, HW)


def se_forward(x_nchw, fc1_weight, fc2_weight):
    """x_nchw: (N, C, H, W) float32.  Weights in PyTorch (out, in) layout.

    Returns (N, C, H, W) float32.
    """
    n, c, h, w = x_nchw.shape
    hw = h * w
    x = x_nchw.reshape(n, c, hw)   # free (merges minor dims, no transpose)

    # Largest batch tile that divides n (prefer 4 -> two 512 KiB blocks at the
    # demo shapes; keeps the grid >= 2 so both v7x TensorCores get work).
    if n % 4 == 0:
        b_tile = 4
    elif n % 2 == 0:
        b_tile = 2
    else:
        b_tile = 1
    grid = (n // b_tile,)

    kernel = functools.partial(_se_kernel, b_tile=b_tile, hw=hw)

    grid_spec = pltpu.PrefetchScalarGridSpec(
        num_scalar_prefetch=0,
        grid=grid,
        in_specs=[
            pl.BlockSpec((b_tile, c, hw), lambda i: (i, 0, 0)),    # batched x
            pl.BlockSpec(fc1_weight.shape, lambda i: (0, 0)),      # resident w1
            pl.BlockSpec(fc2_weight.shape, lambda i: (0, 0)),      # resident w2
        ],
        out_specs=pl.BlockSpec((b_tile, c, hw), lambda i: (i, 0, 0)),
    )

    out = pl.pallas_call(
        kernel,
        out_shape=jax.ShapeDtypeStruct((n, c, hw), x.dtype),
        grid_spec=grid_spec,
        compiler_params=pltpu.CompilerParams(
            dimension_semantics=("parallel",),   # batch blocks independent
        ),
    )(x, fc1_weight, fc2_weight)

    return out.reshape(n, c, h, w)   # free reshape back to NCHW


def se_reference(x_nchw, fc1_weight, fc2_weight):
    """Pure-JAX reference mirroring the PyTorch forward."""
    pooled = jnp.mean(x_nchw, axis=(2, 3))                  # (N, C)
    h = jnp.maximum(pooled @ fc1_weight.T, 0.0)             # (N, CR)
    gate = jax.nn.sigmoid(h @ fc2_weight.T)                 # (N, C)
    return x_nchw * gate[:, :, None, None]


if __name__ == "__main__":
    key = jax.random.PRNGKey(0)
    kx, k1, k2 = jax.random.split(key, 3)
    x = jax.random.normal(kx, (N, C, H, W), jnp.float32)          # NCHW
    # PyTorch nn.Linear weights: (out_features, in_features), bias=False.
    fc1_weight = jax.random.normal(k1, (CR, C), jnp.float32) * 0.1
    fc2_weight = jax.random.normal(k2, (C, CR), jnp.float32) * 0.1

    out = jax.jit(se_forward)(x, fc1_weight, fc2_weight)
    out = jax.block_until_ready(out)
    assert out.shape == (N, C, H, W) and out.dtype == jnp.float32

    ref = se_reference(x, fc1_weight, fc2_weight)
    assert jnp.allclose(out, ref, atol=1e-3, rtol=1e-3), "mismatch vs reference"

    print("KERNEL_OK")
</pallas_src>

<mosaic_0001>
module attributes {stable_mosaic.version = 11 : i64} {
  func.func @_se_kernel(%arg0: i32, %arg1: memref<4x128x256xf32, #tpu.memory_space<vmem>>, %arg2: memref<8x128xf32, #tpu.memory_space<vmem>>, %arg3: memref<128x8xf32, #tpu.memory_space<vmem>>, %arg4: memref<4x128x256xf32, #tpu.memory_space<vmem>>) attributes {dimension_semantics = [#tpu.dimension_semantics<parallel>], iteration_bounds = array<i64: 2>, scalar_prefetch = 0 : i64, scratch_operands = 0 : i64, tpu.core_type = #tpu.core_type<tc>, window_params = [{transform_indices = @transform_0, window_bounds = array<i64: 4, 128, 256>}, {pipeline_mode = #tpu.pipeline_mode<synchronous>, transform_indices = @transform_1, window_bounds = array<i64: 8, 128>}, {pipeline_mode = #tpu.pipeline_mode<synchronous>, transform_indices = @transform_2, window_bounds = array<i64: 128, 8>}, {transform_indices = @transform_3, window_bounds = array<i64: 4, 128, 256>}]} {
    %c0 = arith.constant 0 : index
    %c0_0 = arith.constant 0 : index
    %c0_1 = arith.constant 0 : index
    %0 = vector.load %arg1[%c0, %c0_0, %c0_1] : memref<4x128x256xf32, #tpu.memory_space<vmem>>, vector<1x128x256xf32>
    %1 = vector.shape_cast %0 : vector<1x128x256xf32> to vector<128x256xf32>
    %cst = arith.constant dense<0.000000e+00> : vector<128xf32>
    %2 = vector.multi_reduction <add>, %1, %cst [1] : vector<128x256xf32> to vector<128xf32>
    %3 = vector.shape_cast %2 : vector<128xf32> to vector<128x1xf32>
    %cst_2 = arith.constant 3.906250e-03 : f32
    %4 = vector.broadcast %cst_2 : f32 to vector<128x1xf32>
    %5 = arith.mulf %3, %4 : vector<128x1xf32>
    %c1 = arith.constant 1 : index
    %c0_3 = arith.constant 0 : index
    %c0_4 = arith.constant 0 : index
    %6 = vector.load %arg1[%c1, %c0_3, %c0_4] : memref<4x128x256xf32, #tpu.memory_space<vmem>>, vector<1x128x256xf32>
    %7 = vector.shape_cast %6 : vector<1x128x256xf32> to vector<128x256xf32>
    %cst_5 = arith.constant dense<0.000000e+00> : vector<128xf32>
    %8 = vector.multi_reduction <add>, %7, %cst_5 [1] : vector<128x256xf32> to vector<128xf32>
    %9 = vector.shape_cast %8 : vector<128xf32> to vector<128x1xf32>
    %cst_6 = arith.constant 3.906250e-03 : f32
    %10 = vector.broadcast %cst_6 : f32 to vector<128x1xf32>
    %11 = arith.mulf %9, %10 : vector<128x1xf32>
    %c2 = arith.constant 2 : index
    %c0_7 = arith.constant 0 : index
    %c0_8 = arith.constant 0 : index
    %12 = vector.load %arg1[%c2, %c0_7, %c0_8] : memref<4x128x256xf32, #tpu.memory_space<vmem>>, vector<1x128x256xf32>
    %13 = vector.shape_cast %12 : vector<1x128x256xf32> to vector<128x256xf32>
    %cst_9 = arith.constant dense<0.000000e+00> : vector<128xf32>
    %14 = vector.multi_reduction <add>, %13, %cst_9 [1] : vector<128x256xf32> to vector<128xf32>
    %15 = vector.shape_cast %14 : vector<128xf32> to vector<128x1xf32>
    %cst_10 = arith.constant 3.906250e-03 : f32
    %16 = vector.broadcast %cst_10 : f32 to vector<128x1xf32>
    %17 = arith.mulf %15, %16 : vector<128x1xf32>
    %c3 = arith.constant 3 : index
    %c0_11 = arith.constant 0 : index
    %c0_12 = arith.constant 0 : index
    %18 = vector.load %arg1[%c3, %c0_11, %c0_12] : memref<4x128x256xf32, #tpu.memory_space<vmem>>, vector<1x128x256xf32>
    %19 = vector.shape_cast %18 : vector<1x128x256xf32> to vector<128x256xf32>
    %cst_13 = arith.constant dense<0.000000e+00> : vector<128xf32>
    %20 = vector.multi_reduction <add>, %19, %cst_13 [1] : vector<128x256xf32> to vector<128xf32>
    %21 = vector.shape_cast %20 : vector<128xf32> to vector<128x1xf32>
    %cst_14 = arith.constant 3.906250e-03 : f32
    %22 = vector.broadcast %cst_14 : f32 to vector<128x1xf32>
    %23 = arith.mulf %21, %22 : vector<128x1xf32>
    %24 = tpu.concatenate %5, %11, %17, %23 in 1 : vector<128x1xf32>, vector<128x1xf32>, vector<128x1xf32>, vector<128x1xf32> -> vector<128x4xf32>
    %c0_15 = arith.constant 0 : index
    %c0_16 = arith.constant 0 : index
    %25 = vector.load %arg2[%c0_15, %c0_16] : memref<8x128xf32, #tpu.memory_space<vmem>>, vector<8x128xf32>
    %cst_17 = arith.constant dense<0.000000e+00> : vector<8x4xf32>
    %26 = tpu.matmul %25, %24, %cst_17 {dimension_numbers = #tpu.dot_dimension_numbers<[1], [0], [0], [1], [0, 0, 1, 1], [], []>} : vector<8x128xf32>, vector<128x4xf32>, vector<8x4xf32> -> vector<8x4xf32>
    %cst_18 = arith.constant 0.000000e+00 : f32
    %27 = vector.broadcast %cst_18 : f32 to vector<8x4xf32>
    %28 = arith.maximumf %26, %27 : vector<8x4xf32>
    %c0_19 = arith.constant 0 : index
    %c0_20 = arith.constant 0 : index
    %29 = vector.load %arg3[%c0_19, %c0_20] : memref<128x8xf32, #tpu.memory_space<vmem>>, vector<128x8xf32>
    %cst_21 = arith.constant dense<0.000000e+00> : vector<128x4xf32>
    %30 = tpu.matmul %29, %28, %cst_21 {dimension_numbers = #tpu.dot_dimension_numbers<[1], [0], [0], [1], [0, 0, 1, 1], [], []>} : vector<128x8xf32>, vector<8x4xf32>, vector<128x4xf32> -> vector<128x4xf32>
    %31 = arith.negf %30 : vector<128x4xf32>
    %32 = math.exp %31 : vector<128x4xf32>
    %cst_22 = arith.constant 1.000000e+00 : f32
    %33 = vector.broadcast %cst_22 : f32 to vector<128x4xf32>
    %34 = arith.addf %33, %32 : vector<128x4xf32>
    %35 = arith.divf %33, %34 : vector<128x4xf32>
    %36 = vector.extract_strided_slice %35 {offsets = [0, 0], sizes = [128, 1], strides = [1, 1]} : vector<128x4xf32> to vector<128x1xf32>
    %c0_23 = arith.constant 0 : index
    %c0_24 = arith.constant 0 : index
    %c0_25 = arith.constant 0 : index
    %37 = vector.load %arg1[%c0_23, %c0_24, %c0_25] : memref<4x128x256xf32, #tpu.memory_space<vmem>>, vector<1x128x256xf32>
    %38 = vector.shape_cast %37 : vector<1x128x256xf32> to vector<128x256xf32>
    %39 = vector.broadcast %36 : vector<128x1xf32> to vector<128x256xf32>
    %40 = arith.mulf %38, %39 : vector<128x256xf32>
    %c0_26 = arith.constant 0 : index
    %c0_27 = arith.constant 0 : index
    %c0_28 = arith.constant 0 : index
    %41 = vector.load %arg4[%c0_26, %c0_27, %c0_28] : memref<4x128x256xf32, #tpu.memory_space<vmem>>, vector<1x128x256xf32>
    %42 = vector.shape_cast %41 : vector<1x128x256xf32> to vector<128x256xf32>
    %43 = vector.shape_cast %40 : vector<128x256xf32> to vector<1x128x256xf32>
    tpu.vector_store %arg4[%c0_26, %c0_27, %c0_28], %43 {strides = array<i32>} : memref<4x128x256xf32, #tpu.memory_space<vmem>>, vector<1x128x256xf32>,
    %44 = vector.extract_strided_slice %35 {offsets = [0, 1], sizes = [128, 1], strides = [1, 1]} : vector<128x4xf32> to vector<128x1xf32>
    %c1_29 = arith.constant 1 : index
    %c0_30 = arith.constant 0 : index
    %c0_31 = arith.constant 0 : index
    %45 = vector.load %arg1[%c1_29, %c0_30, %c0_31] : memref<4x128x256xf32, #tpu.memory_space<vmem>>, vector<1x128x256xf32>
    %46 = vector.shape_cast %45 : vector<1x128x256xf32> to vector<128x256xf32>
    %47 = vector.broadcast %44 : vector<128x1xf32> to vector<128x256xf32>
    %48 = arith.mulf %46, %47 : vector<128x256xf32>
    %c1_32 = arith.constant 1 : index
    %c0_33 = arith.constant 0 : index
    %c0_34 = arith.constant 0 : index
    %49 = vector.load %arg4[%c1_32, %c0_33, %c0_34] : memref<4x128x256xf32, #tpu.memory_space<vmem>>, vector<1x128x256xf32>
    %50 = vector.shape_cast %49 : vector<1x128x256xf32> to vector<128x256xf32>
    %51 = vector.shape_cast %48 : vector<128x256xf32> to vector<1x128x256xf32>
    tpu.vector_store %arg4[%c1_32, %c0_33, %c0_34], %51 {strides = array<i32>} : memref<4x128x256xf32, #tpu.memory_space<vmem>>, vector<1x128x256xf32>,
    %52 = vector.extract_strided_slice %35 {offsets = [0, 2], sizes = [128, 1], strides = [1, 1]} : vector<128x4xf32> to vector<128x1xf32>
    %c2_35 = arith.constant 2 : index
    %c0_36 = arith.constant 0 : index
    %c0_37 = arith.constant 0 : index
    %53 = vector.load %arg1[%c2_35, %c0_36, %c0_37] : memref<4x128x256xf32, #tpu.memory_space<vmem>>, vector<1x128x256xf32>
    %54 = vector.shape_cast %53 : vector<1x128x256xf32> to vector<128x256xf32>
    %55 = vector.broadcast %52 : vector<128x1xf32> to vector<128x256xf32>
    %56 = arith.mulf %54, %55 : vector<128x256xf32>
    %c2_38 = arith.constant 2 : index
    %c0_39 = arith.constant 0 : index
    %c0_40 = arith.constant 0 : index
    %57 = vector.load %arg4[%c2_38, %c0_39, %c0_40] : memref<4x128x256xf32, #tpu.memory_space<vmem>>, vector<1x128x256xf32>
    %58 = vector.shape_cast %57 : vector<1x128x256xf32> to vector<128x256xf32>
    %59 = vector.shape_cast %56 : vector<128x256xf32> to vector<1x128x256xf32>
    tpu.vector_store %arg4[%c2_38, %c0_39, %c0_40], %59 {strides = array<i32>} : memref<4x128x256xf32, #tpu.memory_space<vmem>>, vector<1x128x256xf32>,
    %60 = vector.extract_strided_slice %35 {offsets = [0, 3], sizes = [128, 1], strides = [1, 1]} : vector<128x4xf32> to vector<128x1xf32>
    %c3_41 = arith.constant 3 : index
    %c0_42 = arith.constant 0 : index
    %c0_43 = arith.constant 0 : index
    %61 = vector.load %arg1[%c3_41, %c0_42, %c0_43] : memref<4x128x256xf32, #tpu.memory_space<vmem>>, vector<1x128x256xf32>
    %62 = vector.shape_cast %61 : vector<1x128x256xf32> to vector<128x256xf32>
    %63 = vector.broadcast %60 : vector<128x1xf32> to vector<128x256xf32>
    %64 = arith.mulf %62, %63 : vector<128x256xf32>
    %c3_44 = arith.constant 3 : index
    %c0_45 = arith.constant 0 : index
    %c0_46 = arith.constant 0 : index
    %65 = vector.load %arg4[%c3_44, %c0_45, %c0_46] : memref<4x128x256xf32, #tpu.memory_space<vmem>>, vector<1x128x256xf32>
    %66 = vector.shape_cast %65 : vector<1x128x256xf32> to vector<128x256xf32>
    %67 = vector.shape_cast %64 : vector<128x256xf32> to vector<1x128x256xf32>
    tpu.vector_store %arg4[%c3_44, %c0_45, %c0_46], %67 {strides = array<i32>} : memref<4x128x256xf32, #tpu.memory_space<vmem>>, vector<1x128x256xf32>,
    return
  }
  func.func @transform_0(%arg0: i32) -> (i32, i32, i32) {
    %c0_i32 = arith.constant 0 : i32
    %c0_i32_0 = arith.constant 0 : i32
    %c0_i32_1 = arith.constant 0 : i32
    return %arg0, %c0_i32, %c0_i32_0 : i32, i32, i32
  }
  func.func @transform_1(%arg0: i32) -> (i32, i32) {
    %c0_i32 = arith.constant 0 : i32
    %c0_i32_0 = arith.constant 0 : i32
    %c0_i32_1 = arith.constant 0 : i32
    return %c0_i32, %c0_i32_0 : i32, i32
  }
  func.func @transform_2(%arg0: i32) -> (i32, i32) {
    %c0_i32 = arith.constant 0 : i32
    %c0_i32_0 = arith.constant 0 : i32
    %c0_i32_1 = arith.constant 0 : i32
    return %c0_i32, %c0_i32_0 : i32, i32
  }
  func.func @transform_3(%arg0: i32) -> (i32, i32, i32) {
    %c0_i32 = arith.constant 0 : i32
    %c0_i32_0 = arith.constant 0 : i32
    %c0_i32_1 = arith.constant 0 : i32
    return %arg0, %c0_i32, %c0_i32_0 : i32, i32, i32
  }
}

</mosaic_0001>

<llo_original>
// kernel: se_forward.1
$region0: #{se_forward.1}
  #allocation0 [shape = 'u32[]', space=smem, size = 0x4, offset = 0x4, fixed_abs, tag = 'smem constant byte address 0x4 - core index']
  #allocation1 [shape = 'u32[144,128]{1,0:T(1,128)}', space=vmem, size = 0x12000, scoped, tag = 'internal scratch']
  %s0 = inlined_call_operand.vmem [shape: f32[8,128,256], index: 0, kind: input, shape index: {}]
  %s1 = inlined_call_operand.vmem [shape: f32[8,128], index: 1, kind: input, shape index: {}]
  %s2 = inlined_call_operand.vmem [shape: f32[128,8], index: 2, kind: input, shape index: {}]
  %s3 = inlined_call_operand.vmem [shape: f32[8,128,256], index: 3, kind: output, shape index: {}]
  %s4 = sld [smem:[#allocation0]]
  $region45: #{se_forward.1} parent=0
    _
  %s6 = ssub.s32 1, %s4
  %s7 = scalar_select 0, %s6, %s4
  loop: start=0, step=1, limit=4
  $region2: #{se_forward.1} parent=0 // loop_pre_header
    _
  $region3: #{se_forward.1} parent=0 // loop_header
    %s9 = sphi 0, %s13
    %p10 = scmp.ge.s32.totalorder %s9, 4
    %s19 = sphi 0, %s21
    %s22 = sphi 0, %s19
    %s23 = sphi 0, %s22
    %s39 = sphi 0, %s23
    %s43 = sphi 0, %s43
    %s45 = sphi 0, %s43
    %s46 = sphi 0, %s45
    %s60 = sphi 0, %s46
    %s64 = sphi 0, %s64
    %s66 = sphi 0, %s64
    %s67 = sphi 0, %s66
    %s81 = sphi 0, %s67
    %s87 = sphi 0, %s89
    %s90 = sphi 0, %s87
    %s91 = sphi 0, %s90
    %s107 = sphi 0, %s91
  $region4: #{se_forward.1} parent=0 // loop_header_branch
    %12 = sbr.rel (%p10) target = $region8
  $region5: #{se_forward.1} parent=0 // loop_body
    %s14 = ssub.s32 %s9, 1
    %s15 = ssub.s32 %s9, 2
    %s16 = sadd.s32 %s9, 1
    %s17 = ssub.s32 %s9, %s16
    %p18 = scmp.eq.s32.totalorder %s17, 0
    %s20 = sadd.s32 %s19, 1
    %s21 = scalar_select %p18, %s19, %s20
    %p24 = pneg %p18
    %p25 = scmp.eq.s32.totalorder %s9, 1
    %p26 = por %p24, %p25
    %p27 = scmp.ne.s32.totalorder %s19, %s22
    %p28 = scmp.eq.s32.totalorder %s9, 0
    %p29 = por %p27, %p28
    %p30 = scmp.ne.s32.totalorder %s19, %s22
    %p31 = scmp.eq.s32.totalorder %s14, 1
    %p32 = por %p30, %p31
    %p33 = scmp.ne.s32.totalorder %s22, %s23
    %p34 = scmp.eq.s32.totalorder %s14, 0
    %p35 = por %p33, %p34
    %p36 = scmp.ne.s32.totalorder %s22, %s23
    %p37 = scmp.eq.s32.totalorder %s15, 1
    %p38 = por %p36, %p37
    %p40 = scmp.ne.s32.totalorder %s23, %s39
    %p41 = scmp.eq.s32.totalorder %s15, 0
    %p42 = por %p40, %p41
    %s44 = sadd.s32 %s43, 1
    %p47 = scmp.eq.s32.totalorder %s9, 1
    %p48 = scmp.ne.s32.totalorder %s43, %s45
    %p49 = scmp.eq.s32.totalorder %s9, 0
    %p50 = por %p48, %p49
    %p51 = scmp.ne.s32.totalorder %s43, %s45
    %p52 = scmp.eq.s32.totalorder %s14, 1
    %p53 = por %p51, %p52
    %p54 = scmp.ne.s32.totalorder %s45, %s46
    %p55 = scmp.eq.s32.totalorder %s14, 0
    %p56 = por %p54, %p55
    %p57 = scmp.ne.s32.totalorder %s45, %s46
    %p58 = scmp.eq.s32.totalorder %s15, 1
    %p59 = por %p57, %p58
    %p61 = scmp.ne.s32.totalorder %s46, %s60
    %p62 = scmp.eq.s32.totalorder %s15, 0
    %p63 = por %p61, %p62
    %s65 = sadd.s32 %s64, 1
    %p68 = scmp.eq.s32.totalorder %s9, 1
    %p69 = scmp.ne.s32.totalorder %s64, %s66
    %p70 = scmp.eq.s32.totalorder %s9, 0
    %p71 = por %p69, %p70
    %p72 = scmp.ne.s32.totalorder %s64, %s66
    %p73 = scmp.eq.s32.totalorder %s14, 1
    %p74 = por %p72, %p73
    %p75 = scmp.ne.s32.totalorder %s66, %s67
    %p76 = scmp.eq.s32.totalorder %s14, 0
    %p77 = por %p75, %p76
    %p78 = scmp.ne.s32.totalorder %s66, %s67
    %p79 = scmp.eq.s32.totalorder %s15, 1
    %p80 = por %p78, %p79
    %p82 = scmp.ne.s32.totalorder %s67, %s81
    %p83 = scmp.eq.s32.totalorder %s15, 0
    %p84 = por %p82, %p83
    %s85 = ssub.s32 %s9, %s16
    %p86 = scmp.eq.s32.totalorder %s85, 0
    %s88 = sadd.s32 %s87, 1
    %s89 = scalar_select %p86, %s87, %s88
    %p92 = pneg %p86
    %p93 = scmp.eq.s32.totalorder %s9, 1
    %p94 = por %p92, %p93
    %p95 = scmp.ne.s32.totalorder %s87, %s90
    %p96 = scmp.eq.s32.totalorder %s9, 0
    %p97 = por %p95, %p96
    %p98 = scmp.ne.s32.totalorder %s87, %s90
    %p99 = scmp.eq.s32.totalorder %s14, 1
    %p100 = por %p98, %p99
    %p101 = scmp.ne.s32.totalorder %s90, %s91
    %p102 = scmp.eq.s32.totalorder %s14, 0
    %p103 = por %p101, %p102
    %p104 = scmp.ne.s32.totalorder %s90, %s91
    %p105 = scmp.eq.s32.totalorder %s15, 1
    %p106 = por %p104, %p105
    %p108 = scmp.ne.s32.totalorder %s91, %s107
    %p109 = scmp.eq.s32.totalorder %s15, 0
    %p110 = por %p108, %p109
    %p111 = scmp.le.s32.totalorder 1, %s9
    %p112 = scmp.lt.s32.totalorder %s9, 3
    %p113 = pnand %p111, %p112
    %p114 = pneg %p113
    // Predicated region
    $region9: #{se_forward.1} parent=5 // pred_check
      _
    $region10: #{se_forward.1} parent=5 // pred_check_branch
      %116 = sbr.rel (%p113) target = $region12
    $region11: #{se_forward.1} parent=5 // pred_region
      %s117 = ssub.s32 %s9, 1
      // Predicated region
      $region13: #{se_forward.1} parent=11 // pred_check
        %p118 = pneg %p56
      $region14: #{se_forward.1} parent=11 // pred_check_branch
        %120 = sbr.rel (%p118) target = $region16
      $region15: #{se_forward.1} parent=11 // pred_region
        _
      $region16: #{se_forward.1} parent=11 // pred_fallthru
        _
      // Predicated region
      $region17: #{se_forward.1} parent=11 // pred_check
        %p121 = pneg %p77
      $region18: #{se_forward.1} parent=11 // pred_check_branch
        %123 = sbr.rel (%p121) target = $region20
      $region19: #{se_forward.1} parent=11 // pred_region
        _
      $region20: #{se_forward.1} parent=11 // pred_fallthru
        _
    $region12: #{se_forward.1} parent=5 // pred_fallthru
      _
    %p124 = scmp.lt.s32.totalorder %s9, 2
    // Predicated region
    $region21: #{se_forward.1} parent=5 // pred_check
      %p125 = pneg %p124
    $region22: #{se_forward.1} parent=5 // pred_check_branch
      %127 = sbr.rel (%p125) target = $region24
    $region23: #{se_forward.1} parent=5 // pred_region
      // Predicated region
      $region25: #{se_forward.1} parent=23 // pred_check
        %p128 = pneg %p29
      $region26: #{se_forward.1} parent=23 // pred_check_branch
        %130 = sbr.rel (%p128) target = $region28
      $region27: #{se_forward.1} parent=23 // pred_region
        %s131 = smul.u32 4, %s9
        %p132 = scmp.lt.s32.totalorder %s131, 7
        %s133 = scalar_select %p132, %s131, 7
        %s134 = smul.addr %s133, 32
        %s135 = smul.addr %s134, 8
        %s136 = scalar_lea.vmem %s0, %s135
        %s137 = smul.u32 4, %s9
      $region28: #{se_forward.1} parent=23 // pred_fallthru
        _
    $region24: #{se_forward.1} parent=5 // pred_fallthru
      _
    %p138 = scmp.le.s32.totalorder 1, %s9
    %p139 = scmp.lt.s32.totalorder %s9, 3
    %p140 = pnand %p138, %p139
    %p141 = pneg %p140
    // Predicated region
    $region29: #{se_forward.1} parent=5 // pred_check
      _
    $region30: #{se_forward.1} parent=5 // pred_check_branch
      %143 = sbr.rel (%p140) target = $region32
    $region31: #{se_forward.1} parent=5 // pred_region
      %s144 = ssub.s32 %s9, 1
      %s145 = smul.u32 4, %s14
      %p146 = scmp.lt.s32.totalorder %s145, 7
      %s147 = scalar_select %p146, %s145, 7
      %s148 = smul.addr %s147, 32
      %s149 = smul.addr %s148, 8
      %s150 = scalar_lea.vmem %s0, %s149
      %p151 = pneg %p35
      %p152 = pneg %p32
      %p153 = pneg %p56
      %p154 = pneg %p53
      %p155 = pneg %p77
      %p156 = pneg %p74
      %p157 = pneg %p103
      %p158 = pneg %p100
      %s159 = smul.u32 4, %s14
      %p160 = scmp.lt.s32.totalorder %s159, 7
      %s161 = scalar_select %p160, %s159, 7
      %s162 = smul.addr %s161, 32
      %s163 = smul.addr %s162, 8
      %s164 = scalar_lea.vmem %s3, %s163
      %s165 = smul.u32 4, %s14
      %p166 = scmp.lt.s32.totalorder %s165, 7
      %s167 = scalar_select %p166, %s165, 7
      %s168 = smul.addr %s167, 32
      %s169 = smul.addr %s168, 8
      %s170 = scalar_lea.vmem %s0, %s169
      %s171 = smul.u32 4, %s14
      %s172 = smul.u32 4, %s14
      %p173 = scmp.lt.s32.totalorder %s172, 7
      %s174 = scalar_select %p173, %s172, 7
      %s175 = smul.addr %s174, 32
      %s176 = smul.addr %s175, 8
      %s177 = scalar_lea.vmem %s3, %s176
      %s178 = smul.u32 4, %s14
      %v179 = vld [vmem:[%s170] sm:$0xff]
      %v180 = vld [vmem:[%s170 + $0x8] sm:$0xff]
      %v181 = vld [vmem:[%s170 + $0x10] sm:$0xff]
      %v182 = vld [vmem:[%s170 + $0x18] sm:$0xff]
      %v183 = vld [vmem:[%s170 + $0x20] sm:$0xff]
      %v184 = vld [vmem:[%s170 + $0x28] sm:$0xff]
      %v185 = vld [vmem:[%s170 + $0x30] sm:$0xff]
      %v186 = vld [vmem:[%s170 + $0x38] sm:$0xff]
      %v187 = vld [vmem:[%s170 + $0x40] sm:$0xff]
      %v188 = vld [vmem:[%s170 + $0x48] sm:$0xff]
      %v189 = vld [vmem:[%s170 + $0x50] sm:$0xff]
      %v190 = vld [vmem:[%s170 + $0x58] sm:$0xff]
      %v191 = vld [vmem:[%s170 + $0x60] sm:$0xff]
      %v192 = vld [vmem:[%s170 + $0x68] sm:$0xff]
      %v193 = vld [vmem:[%s170 + $0x70] sm:$0xff]
      %v194 = vld [vmem:[%s170 + $0x78] sm:$0xff]
      %v195 = vld [vmem:[%s170 + $0x80] sm:$0xff]
      %v196 = vld [vmem:[%s170 + $0x88] sm:$0xff]
      %v197 = vld [vmem:[%s170 + $0x90] sm:$0xff]
      %v198 = vld [vmem:[%s170 + $0x98] sm:$0xff]
      %v199 = vld [vmem:[%s170 + $0xa0] sm:$0xff]
      %v200 = vld [vmem:[%s170 + $0xa8] sm:$0xff]
      %v201 = vld [vmem:[%s170 + $0xb0] sm:$0xff]
      %v202 = vld [vmem:[%s170 + $0xb8] sm:$0xff]
      %v203 = vld [vmem:[%s170 + $0xc0] sm:$0xff]
      %v204 = vld [vmem:[%s170 + $0xc8] sm:$0xff]
      %v205 = vld [vmem:[%s170 + $0xd0] sm:$0xff]
      %v206 = vld [vmem:[%s170 + $0xd8] sm:$0xff]
      %v207 = vld [vmem:[%s170 + $0xe0] sm:$0xff]
      %v208 = vld [vmem:[%s170 + $0xe8] sm:$0xff]
      %v209 = vld [vmem:[%s170 + $0xf0] sm:$0xff]
      %v210 = vld [vmem:[%s170 + $0xf8] sm:$0xff]
      %v211 = vadd.f32 %v179, %v180
      %212 = vadd.xlane.f32.xlu0 %v211
      %v213 = vpop.xlane.xlu0 %212
      %v214 = vadd.f32 %v181, %v182
      %215 = vadd.xlane.f32.xlu0 %v214
      %v216 = vpop.xlane.xlu0 %215
      %v217 = vadd.f32 %v183, %v184
      %218 = vadd.xlane.f32.xlu0 %v217
      %v219 = vpop.xlane.xlu0 %218
      %v220 = vadd.f32 %v185, %v186
      %221 = vadd.xlane.f32.xlu0 %v220
      %v222 = vpop.xlane.xlu0 %221
      %v223 = vadd.f32 %v187, %v188
      %224 = vadd.xlane.f32.xlu0 %v223
      %v225 = vpop.xlane.xlu0 %224
      %v226 = vadd.f32 %v189, %v190
      %227 = vadd.xlane.f32.xlu0 %v226
      %v228 = vpop.xlane.xlu0 %227
      %v229 = vadd.f32 %v191, %v192
      %230 = vadd.xlane.f32.xlu0 %v229
      %v231 = vpop.xlane.xlu0 %230
      %v232 = vadd.f32 %v193, %v194
      %233 = vadd.xlane.f32.xlu0 %v232
      %v234 = vpop.xlane.xlu0 %233
      %v235 = vadd.f32 %v195, %v196
      %236 = vadd.xlane.f32.xlu0 %v235
      %v237 = vpop.xlane.xlu0 %236
      %v238 = vadd.f32 %v197, %v198
      %239 = vadd.xlane.f32.xlu0 %v238
      %v240 = vpop.xlane.xlu0 %239
      %v241 = vadd.f32 %v199, %v200
      %242 = vadd.xlane.f32.xlu0 %v241
      %v243 = vpop.xlane.xlu0 %242
      %v244 = vadd.f32 %v201, %v202
      %245 = vadd.xlane.f32.xlu0 %v244
      %v246 = vpop.xlane.xlu0 %245
      %v247 = vadd.f32 %v203, %v204
      %248 = vadd.xlane.f32.xlu0 %v247
      %v249 = vpop.xlane.xlu0 %248
      %v250 = vadd.f32 %v205, %v206
      %251 = vadd.xlane.f32.xlu0 %v250
      %v252 = vpop.xlane.xlu0 %251
      %v253 = vadd.f32 %v207, %v208
      %254 = vadd.xlane.f32.xlu0 %v253
      %v255 = vpop.xlane.xlu0 %254
      %v256 = vadd.f32 %v209, %v210
      %257 = vadd.xlane.f32.xlu0 %v256
      %v258 = vpop.xlane.xlu0 %257
      %v259 = vmul.f32 %v213, 0.00390625
      %v260 = vmul.f32 %v216, 0.00390625
      %v261 = vmul.f32 %v219, 0.00390625
      %v262 = vmul.f32 %v222, 0.00390625
      %v263 = vmul.f32 %v225, 0.00390625
      %v264 = vmul.f32 %v228, 0.00390625
      %v265 = vmul.f32 %v231, 0.00390625
      %v266 = vmul.f32 %v234, 0.00390625
      %v267 = vmul.f32 %v237, 0.00390625
      %v268 = vmul.f32 %v240, 0.00390625
      %v269 = vmul.f32 %v243, 0.00390625
      %v270 = vmul.f32 %v246, 0.00390625
      %v271 = vmul.f32 %v249, 0.00390625
      %v272 = vmul.f32 %v252, 0.00390625
      %v273 = vmul.f32 %v255, 0.00390625
      %v274 = vmul.f32 %v258, 0.00390625
      %s275 = scalar_lea.vmem %s170, 256
      %v276 = vld [vmem:[%s275] sm:$0xff]
      %v277 = vld [vmem:[%s275 + $0x8] sm:$0xff]
      %v278 = vld [vmem:[%s275 + $0x10] sm:$0xff]
      %v279 = vld [vmem:[%s275 + $0x18] sm:$0xff]
      %v280 = vld [vmem:[%s275 + $0x20] sm:$0xff]
      %v281 = vld [vmem:[%s275 + $0x28] sm:$0xff]
      %v282 = vld [vmem:[%s275 + $0x30] sm:$0xff]
      %v283 = vld [vmem:[%s275 + $0x38] sm:$0xff]
      %v284 = vld [vmem:[%s275 + $0x40] sm:$0xff]
      %v285 = vld [vmem:[%s275 + $0x48] sm:$0xff]
      %v286 = vld [vmem:[%s275 + $0x50] sm:$0xff]
      %v287 = vld [vmem:[%s275 + $0x58] sm:$0xff]
      %v288 = vld [vmem:[%s275 + $0x60] sm:$0xff]
      %v289 = vld [vmem:[%s275 + $0x68] sm:$0xff]
      %v290 = vld [vmem:[%s275 + $0x70] sm:$0xff]
      %v291 = vld [vmem:[%s275 + $0x78] sm:$0xff]
      %v292 = vld [vmem:[%s275 + $0x80] sm:$0xff]
      %v293 = vld [vmem:[%s275 + $0x88] sm:$0xff]
      %v294 = vld [vmem:[%s275 + $0x90] sm:$0xff]
      %v295 = vld [vmem:[%s275 + $0x98] sm:$0xff]
      %v296 = vld [vmem:[%s275 + $0xa0] sm:$0xff]
      %v297 = vld [vmem:[%s275 + $0xa8] sm:$0xff]
      %v298 = vld [vmem:[%s275 + $0xb0] sm:$0xff]
      %v299 = vld [vmem:[%s275 + $0xb8] sm:$0xff]
      %v300 = vld [vmem:[%s275 + $0xc0] sm:$0xff]
      %v301 = vld [vmem:[%s275 + $0xc8] sm:$0xff]
      %v302 = vld [vmem:[%s275 + $0xd0] sm:$0xff]
      %v303 = vld [vmem:[%s275 + $0xd8] sm:$0xff]
      %v304 = vld [vmem:[%s275 + $0xe0] sm:$0xff]
      %v305 = vld [vmem:[%s275 + $0xe8] sm:$0xff]
      %v306 = vld [vmem:[%s275 + $0xf0] sm:$0xff]
      %v307 = vld [vmem:[%s275 + $0xf8] sm:$0xff]
      %v308 = vadd.f32 %v276, %v277
      %309 = vadd.xlane.f32.xlu0 %v308
      %v310 = vpop.xlane.xlu0 %309
      %v311 = vadd.f32 %v278, %v279
      %312 = vadd.xlane.f32.xlu0 %v311
      %v313 = vpop.xlane.xlu0 %312
      %v314 = vadd.f32 %v280, %v281
      %315 = vadd.xlane.f32.xlu0 %v314
      %v316 = vpop.xlane.xlu0 %315
      %v317 = vadd.f32 %v282, %v283
      %318 = vadd.xlane.f32.xlu0 %v317
      %v319 = vpop.xlane.xlu0 %318
      %v320 = vadd.f32 %v284, %v285
      %321 = vadd.xlane.f32.xlu0 %v320
      %v322 = vpop.xlane.xlu0 %321
      %v323 = vadd.f32 %v286, %v287
      %324 = vadd.xlane.f32.xlu0 %v323
      %v325 = vpop.xlane.xlu0 %324
      %v326 = vadd.f32 %v288, %v289
      %327 = vadd.xlane.f32.xlu0 %v326
      %v328 = vpop.xlane.xlu0 %327
      %v329 = vadd.f32 %v290, %v291
      %330 = vadd.xlane.f32.xlu0 %v329
      %v331 = vpop.xlane.xlu0 %330
      %v332 = vadd.f32 %v292, %v293
      %333 = vadd.xlane.f32.xlu0 %v332
      %v334 = vpop.xlane.xlu0 %333
      %v335 = vadd.f32 %v294, %v295
      %336 = vadd.xlane.f32.xlu0 %v335
      %v337 = vpop.xlane.xlu0 %336
      %v338 = vadd.f32 %v296, %v297
      %339 = vadd.xlane.f32.xlu0 %v338
      %v340 = vpop.xlane.xlu0 %339
      %v341 = vadd.f32 %v298, %v299
      %342 = vadd.xlane.f32.xlu0 %v341
      %v343 = vpop.xlane.xlu0 %342
      %v344 = vadd.f32 %v300, %v301
      %345 = vadd.xlane.f32.xlu0 %v344
      %v346 = vpop.xlane.xlu0 %345
      %v347 = vadd.f32 %v302, %v303
      %348 = vadd.xlane.f32.xlu0 %v347
      %v349 = vpop.xlane.xlu0 %348
      %v350 = vadd.f32 %v304, %v305
      %351 = vadd.xlane.f32.xlu0 %v350
      %v352 = vpop.xlane.xlu0 %351
      %v353 = vadd.f32 %v306, %v307
      %354 = vadd.xlane.f32.xlu0 %v353
      %v355 = vpop.xlane.xlu0 %354
      %v356 = vmul.f32 %v310, 0.00390625
      %v357 = vmul.f32 %v313, 0.00390625
      %v358 = vmul.f32 %v316, 0.00390625
      %v359 = vmul.f32 %v319, 0.00390625
      %v360 = vmul.f32 %v322, 0.00390625
      %v361 = vmul.f32 %v325, 0.00390625
      %v362 = vmul.f32 %v328, 0.00390625
      %v363 = vmul.f32 %v331, 0.00390625
      %v364 = vmul.f32 %v334, 0.00390625
      %v365 = vmul.f32 %v337, 0.00390625
      %v366 = vmul.f32 %v340, 0.00390625
      %v367 = vmul.f32 %v343, 0.00390625
      %v368 = vmul.f32 %v346, 0.00390625
      %v369 = vmul.f32 %v349, 0.00390625
      %v370 = vmul.f32 %v352, 0.00390625
      %v371 = vmul.f32 %v355, 0.00390625
      %s372 = scalar_lea.vmem %s170, 512
      %v373 = vld [vmem:[%s372] sm:$0xff]
      %v374 = vld [vmem:[%s372 + $0x8] sm:$0xff]
      %v375 = vld [vmem:[%s372 + $0x10] sm:$0xff]
      %v376 = vld [vmem:[%s372 + $0x18] sm:$0xff]
      %v377 = vld [vmem:[%s372 + $0x20] sm:$0xff]
      %v378 = vld [vmem:[%s372 + $0x28] sm:$0xff]
      %v379 = vld [vmem:[%s372 + $0x30] sm:$0xff]
      %v380 = vld [vmem:[%s372 + $0x38] sm:$0xff]
      %v381 = vld [vmem:[%s372 + $0x40] sm:$0xff]
      %v382 = vld [vmem:[%s372 + $0x48] sm:$0xff]
      %v383 = vld [vmem:[%s372 + $0x50] sm:$0xff]
      %v384 = vld [vmem:[%s372 + $0x58] sm:$0xff]
      %v385 = vld [vmem:[%s372 + $0x60] sm:$0xff]
      %v386 = vld [vmem:[%s372 + $0x68] sm:$0xff]
      %v387 = vld [vmem:[%s372 + $0x70] sm:$0xff]
      %v388 = vld [vmem:[%s372 + $0x78] sm:$0xff]
      %v389 = vld [vmem:[%s372 + $0x80] sm:$0xff]
      %v390 = vld [vmem:[%s372 + $0x88] sm:$0xff]
      %v391 = vld [vmem:[%s372 + $0x90] sm:$0xff]
      %v392 = vld [vmem:[%s372 + $0x98] sm:$0xff]
      %v393 = vld [vmem:[%s372 + $0xa0] sm:$0xff]
      %v394 = vld [vmem:[%s372 + $0xa8] sm:$0xff]
      %v395 = vld [vmem:[%s372 + $0xb0] sm:$0xff]
      %v396 = vld [vmem:[%s372 + $0xb8] sm:$0xff]
      %v397 = vld [vmem:[%s372 + $0xc0] sm:$0xff]
      %v398 = vld [vmem:[%s372 + $0xc8] sm:$0xff]
      %v399 = vld [vmem:[%s372 + $0xd0] sm:$0xff]
      %v400 = vld [vmem:[%s372 + $0xd8] sm:$0xff]
      %v401 = vld [vmem:[%s372 + $0xe0] sm:$0xff]
      %v402 = vld [vmem:[%s372 + $0xe8] sm:$0xff]
      %v403 = vld [vmem:[%s372 + $0xf0] sm:$0xff]
      %v404 = vld [vmem:[%s372 + $0xf8] sm:$0xff]
      %v405 = vadd.f32 %v373, %v374
      %406 = vadd.xlane.f32.xlu0 %v405
      %v407 = vpop.xlane.xlu0 %406
      %v408 = vadd.f32 %v375, %v376
      %409 = vadd.xlane.f32.xlu0 %v408
      %v410 = vpop.xlane.xlu0 %409
      %v411 = vadd.f32 %v377, %v378
      %412 = vadd.xlane.f32.xlu0 %v411
      %v413 = vpop.xlane.xlu0 %412
      %v414 = vadd.f32 %v379, %v380
      %415 = vadd.xlane.f32.xlu0 %v414
      %v416 = vpop.xlane.xlu0 %415
      %v417 = vadd.f32 %v381, %v382
      %418 = vadd.xlane.f32.xlu0 %v417
      %v419 = vpop.xlane.xlu0 %418
      %v420 = vadd.f32 %v383, %v384
      %421 = vadd.xlane.f32.xlu0 %v420
      %v422 = vpop.xlane.xlu0 %421
      %v423 = vadd.f32 %v385, %v386
      %424 = vadd.xlane.f32.xlu0 %v423
      %v425 = vpop.xlane.xlu0 %424
      %v426 = vadd.f32 %v387, %v388
      %427 = vadd.xlane.f32.xlu0 %v426
      %v428 = vpop.xlane.xlu0 %427
      %v429 = vadd.f32 %v389, %v390
      %430 = vadd.xlane.f32.xlu0 %v429
      %v431 = vpop.xlane.xlu0 %430
      %v432 = vadd.f32 %v391, %v392
      %433 = vadd.xlane.f32.xlu0 %v432
      %v434 = vpop.xlane.xlu0 %433
      %v435 = vadd.f32 %v393, %v394
      %436 = vadd.xlane.f32.xlu0 %v435
      %v437 = vpop.xlane.xlu0 %436
      %v438 = vadd.f32 %v395, %v396
      %439 = vadd.xlane.f32.xlu0 %v438
      %v440 = vpop.xlane.xlu0 %439
      %v441 = vadd.f32 %v397, %v398
      %442 = vadd.xlane.f32.xlu0 %v441
      %v443 = vpop.xlane.xlu0 %442
      %v444 = vadd.f32 %v399, %v400
      %445 = vadd.xlane.f32.xlu0 %v444
      %v446 = vpop.xlane.xlu0 %445
      %v447 = vadd.f32 %v401, %v402
      %448 = vadd.xlane.f32.xlu0 %v447
      %v449 = vpop.xlane.xlu0 %448
      %v450 = vadd.f32 %v403, %v404
      %451 = vadd.xlane.f32.xlu0 %v450
      %v452 = vpop.xlane.xlu0 %451
      %v453 = vmul.f32 %v407, 0.00390625
      %v454 = vmul.f32 %v410, 0.00390625
      %v455 = vmul.f32 %v413, 0.00390625
      %v456 = vmul.f32 %v416, 0.00390625
      %v457 = vmul.f32 %v419, 0.00390625
      %v458 = vmul.f32 %v422, 0.00390625
      %v459 = vmul.f32 %v425, 0.00390625
      %v460 = vmul.f32 %v428, 0.00390625
      %v461 = vmul.f32 %v431, 0.00390625
      %v462 = vmul.f32 %v434, 0.00390625
      %v463 = vmul.f32 %v437, 0.00390625
      %v464 = vmul.f32 %v440, 0.00390625
      %v465 = vmul.f32 %v443, 0.00390625
      %v466 = vmul.f32 %v446, 0.00390625
      %v467 = vmul.f32 %v449, 0.00390625
      %v468 = vmul.f32 %v452, 0.00390625
      %s469 = scalar_lea.vmem %s170, 768
      %v470 = vld [vmem:[%s469] sm:$0xff]
      %v471 = vld [vmem:[%s469 + $0x8] sm:$0xff]
      %v472 = vld [vmem:[%s469 + $0x10] sm:$0xff]
      %v473 = vld [vmem:[%s469 + $0x18] sm:$0xff]
      %v474 = vld [vmem:[%s469 + $0x20] sm:$0xff]
      %v475 = vld [vmem:[%s469 + $0x28] sm:$0xff]
      %v476 = vld [vmem:[%s469 + $0x30] sm:$0xff]
      %v477 = vld [vmem:[%s469 + $0x38] sm:$0xff]
      %v478 = vld [vmem:[%s469 + $0x40] sm:$0xff]
      %v479 = vld [vmem:[%s469 + $0x48] sm:$0xff]
      %v480 = vld [vmem:[%s469 + $0x50] sm:$0xff]
      %v481 = vld [vmem:[%s469 + $0x58] sm:$0xff]
      %v482 = vld [vmem:[%s469 + $0x60] sm:$0xff]
      %v483 = vld [vmem:[%s469 + $0x68] sm:$0xff]
      %v484 = vld [vmem:[%s469 + $0x70] sm:$0xff]
      %v485 = vld [vmem:[%s469 + $0x78] sm:$0xff]
      %v486 = vld [vmem:[%s469 + $0x80] sm:$0xff]
      %v487 = vld [vmem:[%s469 + $0x88] sm:$0xff]
      %v488 = vld [vmem:[%s469 + $0x90] sm:$0xff]
      %v489 = vld [vmem:[%s469 + $0x98] sm:$0xff]
      %v490 = vld [vmem:[%s469 + $0xa0] sm:$0xff]
      %v491 = vld [vmem:[%s469 + $0xa8] sm:$0xff]
      %v492 = vld [vmem:[%s469 + $0xb0] sm:$0xff]
      %v493 = vld [vmem:[%s469 + $0xb8] sm:$0xff]
      %v494 = vld [vmem:[%s469 + $0xc0] sm:$0xff]
      %v495 = vld [vmem:[%s469 + $0xc8] sm:$0xff]
      %v496 = vld [vmem:[%s469 + $0xd0] sm:$0xff]
      %v497 = vld [vmem:[%s469 + $0xd8] sm:$0xff]
      %v498 = vld [vmem:[%s469 + $0xe0] sm:$0xff]
      %v499 = vld [vmem:[%s469 + $0xe8] sm:$0xff]
      %v500 = vld [vmem:[%s469 + $0xf0] sm:$0xff]
      %v501 = vld [vmem:[%s469 + $0xf8] sm:$0xff]
      %v502 = vadd.f32 %v470, %v471
      %503 = vadd.xlane.f32.xlu0 %v502
      %v504 = vpop.xlane.xlu0 %503
      %v505 = vadd.f32 %v472, %v473
      %506 = vadd.xlane.f32.xlu0 %v505
      %v507 = vpop.xlane.xlu0 %506
      %v508 = vadd.f32 %v474, %v475
      %509 = vadd.xlane.f32.xlu0 %v508
      %v510 = vpop.xlane.xlu0 %509
      %v511 = vadd.f32 %v476, %v477
      %512 = vadd.xlane.f32.xlu0 %v511
      %v513 = vpop.xlane.xlu0 %512
      %v514 = vadd.f32 %v478, %v479
      %515 = vadd.xlane.f32.xlu0 %v514
      %v516 = vpop.xlane.xlu0 %515
      %v517 = vadd.f32 %v480, %v481
      %518 = vadd.xlane.f32.xlu0 %v517
      %v519 = vpop.xlane.xlu0 %518
      %v520 = vadd.f32 %v482, %v483
      %521 = vadd.xlane.f32.xlu0 %v520
      %v522 = vpop.xlane.xlu0 %521
      %v523 = vadd.f32 %v484, %v485
      %524 = vadd.xlane.f32.xlu0 %v523
      %v525 = vpop.xlane.xlu0 %524
      %v526 = vadd.f32 %v486, %v487
      %527 = vadd.xlane.f32.xlu0 %v526
      %v528 = vpop.xlane.xlu0 %527
      %v529 = vadd.f32 %v488, %v489
      %530 = vadd.xlane.f32.xlu0 %v529
      %v531 = vpop.xlane.xlu0 %530
      %v532 = vadd.f32 %v490, %v491
      %533 = vadd.xlane.f32.xlu0 %v532
      %v534 = vpop.xlane.xlu0 %533
      %v535 = vadd.f32 %v492, %v493
      %536 = vadd.xlane.f32.xlu0 %v535
      %v537 = vpop.xlane.xlu0 %536
      %v538 = vadd.f32 %v494, %v495
      %539 = vadd.xlane.f32.xlu0 %v538
      %v540 = vpop.xlane.xlu0 %539
      %v541 = vadd.f32 %v496, %v497
      %542 = vadd.xlane.f32.xlu0 %v541
      %v543 = vpop.xlane.xlu0 %542
      %v544 = vadd.f32 %v498, %v499
      %545 = vadd.xlane.f32.xlu0 %v544
      %v546 = vpop.xlane.xlu0 %545
      %v547 = vadd.f32 %v500, %v501
      %548 = vadd.xlane.f32.xlu0 %v547
      %v549 = vpop.xlane.xlu0 %548
      %v550 = vmul.f32 %v504, 0.00390625
      %v551 = vmul.f32 %v507, 0.00390625
      %v552 = vmul.f32 %v510, 0.00390625
      %v553 = vmul.f32 %v513, 0.00390625
      %v554 = vmul.f32 %v516, 0.00390625
      %v555 = vmul.f32 %v519, 0.00390625
      %v556 = vmul.f32 %v522, 0.00390625
      %v557 = vmul.f32 %v525, 0.00390625
      %v558 = vmul.f32 %v528, 0.00390625
      %v559 = vmul.f32 %v531, 0.00390625
      %v560 = vmul.f32 %v534, 0.00390625
      %v561 = vmul.f32 %v537, 0.00390625
      %v562 = vmul.f32 %v540, 0.00390625
      %v563 = vmul.f32 %v543, 0.00390625
      %v564 = vmul.f32 %v546, 0.00390625
      %v565 = vmul.f32 %v549, 0.00390625
      %vm566 = vcmask 7168
      %v567 = vsel %vm566, %v259, %v356
      %v568 = vsel %vm566, %v260, %v357
      %v569 = vsel %vm566, %v261, %v358
      %v570 = vsel %vm566, %v262, %v359
      %v571 = vsel %vm566, %v263, %v360
      %v572 = vsel %vm566, %v264, %v361
      %v573 = vsel %vm566, %v265, %v362
      %v574 = vsel %vm566, %v266, %v363
      %v575 = vsel %vm566, %v267, %v364
      %v576 = vsel %vm566, %v268, %v365
      %v577 = vsel %vm566, %v269, %v366
      %v578 = vsel %vm566, %v270, %v367
      %v579 = vsel %vm566, %v271, %v368
      %v580 = vsel %vm566, %v272, %v369
      %v581 = vsel %vm566, %v273, %v370
      %v582 = vsel %vm566, %v274, %v371
      %vm583 = vcmask 15360
      %v584 = vsel %vm583, %v567, %v453
      %v585 = vsel %vm583, %v568, %v454
      %v586 = vsel %vm583, %v569, %v455
      %v587 = vsel %vm583, %v570, %v456
      %v588 = vsel %vm583, %v571, %v457
      %v589 = vsel %vm583, %v572, %v458
      %v590 = vsel %vm583, %v573, %v459
      %v591 = vsel %vm583, %v574, %v460
      %v592 = vsel %vm583, %v575, %v461
      %v593 = vsel %vm583, %v576, %v462
      %v594 = vsel %vm583, %v577, %v463
      %v595 = vsel %vm583, %v578, %v464
      %v596 = vsel %vm583, %v579, %v465
      %v597 = vsel %vm583, %v580, %v466
      %v598 = vsel %vm583, %v581, %v467
      %v599 = vsel %vm583, %v582, %v468
      %vm600 = vcmask 23552
      %v601 = vsel %vm600, %v584, %v550
      %v602 = vsel %vm600, %v585, %v551
      %v603 = vsel %vm600, %v586, %v552
      %v604 = vsel %vm600, %v587, %v553
      %v605 = vsel %vm600, %v588, %v554
      %v606 = vsel %vm600, %v589, %v555
      %v607 = vsel %vm600, %v590, %v556
      %v608 = vsel %vm600, %v591, %v557
      %v609 = vsel %vm600, %v592, %v558
      %v610 = vsel %vm600, %v593, %v559
      %v611 = vsel %vm600, %v594, %v560
      %v612 = vsel %vm600, %v595, %v561
      %v613 = vsel %vm600, %v596, %v562
      %v614 = vsel %vm600, %v597, %v563
      %v615 = vsel %vm600, %v598, %v564
      %v616 = vsel %vm600, %v599, %v565
      %v617 = vld [vmem:[%s1] sm:$0xff]
      %618 = vmatprep.subr.mxu0 0.0
      %619 = vmatpush1.msra.mxu0 %v616
      %620 = vmatprep.subr.mxu0 0.0
      %621 = vmatpush1.msra.mxu0 %v615
      %622 = vmatprep.subr.mxu0 0.0
      %623 = vmatpush1.msra.mxu0 %v614
      %624 = vmatprep.subr.mxu0 0.0
      %625 = vmatpush1.msra.mxu0 %v613
      %626 = vmatprep.subr.mxu0 0.0
      %627 = vmatpush1.msra.mxu0 %v612
      %628 = vmatprep.subr.mxu0 0.0
      %629 = vmatpush1.msra.mxu0 %v611
      %630 = vmatprep.subr.mxu0 0.0
      %631 = vmatpush1.msra.mxu0 %v610
      %632 = vmatprep.subr.mxu0 0.0
      %633 = vmatpush1.msra.mxu0 %v609
      %634 = vmatprep.subr.mxu0 0.0
      %635 = vmatpush1.msra.mxu0 %v608
      %636 = vmatprep.subr.mxu0 0.0
      %637 = vmatpush1.msra.mxu0 %v607
      %638 = vmatprep.subr.mxu0 0.0
      %639 = vmatpush1.msra.mxu0 %v606
      %640 = vmatprep.subr.mxu0 0.0
      %641 = vmatpush1.msra.mxu0 %v605
      %642 = vmatprep.subr.mxu0 0.0
      %643 = vmatpush1.msra.mxu0 %v604
      %644 = vmatprep.subr.mxu0 0.0
      %645 = vmatpush1.msra.mxu0 %v603
      %646 = vmatprep.subr.mxu0 0.0
      %647 = vmatpush1.msra.mxu0 %v602
      %648 = vmatprep.subr.mxu0 0.0
      %649 = vmatpush1.msra.mxu0 %v601
      %650 = vmatprep.subr.mxu0 0.0
      %651 = vmatpush2.msra.mxu0 0.0
      %652 = vmatprep.subr.mxu0 0.0
      %653 = vmatpush2.msra.mxu0 0.0
      %654 = vmatprep.subr.mxu0 0.0
      %655 = vmatpush2.msra.mxu0 0.0
      %656 = vmatprep.subr.mxu0 0.0
      %657 = vmatpush2.msra.mxu0 0.0
      %658 = vmatprep.subr.mxu0 0.0
      %659 = vmatpush2.msra.mxu0 0.0
      %660 = vmatprep.subr.mxu0 0.0
      %661 = vmatpush2.msra.mxu0 0.0
      %662 = vmatprep.subr.mxu0 0.0
      %663 = vmatpush2.msra.mxu0 0.0
      %664 = vmatprep.subr.mxu0 0.0
      %665 = vmatpush2.msra.mxu0 0.0
      %666 = vmatprep.subr.mxu0 0.0
      %667 = vmatpush2.msra.mxu0 0.0
      %668 = vmatprep.subr.mxu0 0.0
      %669 = vmatpush2.msra.mxu0 0.0
      %670 = vmatprep.subr.mxu0 0.0
      %671 = vmatpush2.msra.mxu0 0.0
      %672 = vmatprep.subr.mxu0 0.0
      %673 = vmatpush2.msra.mxu0 0.0
      %674 = vmatprep.subr.mxu0 0.0
      %675 = vmatpush2.msra.mxu0 0.0
      %676 = vmatprep.subr.mxu0 0.0
      %677 = vmatpush2.msra.mxu0 0.0
      %678 = vmatprep.subr.mxu0 0.0
      %679 = vmatpush2.msra.mxu0 0.0
      %680 = vmatprep.subr.mxu0 0.0
      %681 = vmatpush2.msra.mxu0 0.0
      %682 = vmatprep.mubr.f32.mxu0 0.0
      %683 = vmatmul.mubr.f32.gmra.mxu0 %v617
      %v684 = vpop.f32.mrf.mxu0
      %v685 = vadd.f32 0.0, %v684
      %v686 = vpop.f32.mrf.mxu0
      %687 = vdwg.mxu0
      %v688 = vmax.f32 %v685, 0.0
      %v689 = vld [vmem:[%s2] sm:$0xff]
      %v690 = vld [vmem:[%s2 + $0x8] sm:$0xff]
      %v691 = vld [vmem:[%s2 + $0x10] sm:$0xff]
      %v692 = vld [vmem:[%s2 + $0x18] sm:$0xff]
      %v693 = vld [vmem:[%s2 + $0x20] sm:$0xff]
      %v694 = vld [vmem:[%s2 + $0x28] sm:$0xff]
      %v695 = vld [vmem:[%s2 + $0x30] sm:$0xff]
      %v696 = vld [vmem:[%s2 + $0x38] sm:$0xff]
      %v697 = vld [vmem:[%s2 + $0x40] sm:$0xff]
      %v698 = vld [vmem:[%s2 + $0x48] sm:$0xff]
      %v699 = vld [vmem:[%s2 + $0x50] sm:$0xff]
      %v700 = vld [vmem:[%s2 + $0x58] sm:$0xff]
      %v701 = vld [vmem:[%s2 + $0x60] sm:$0xff]
      %v702 = vld [vmem:[%s2 + $0x68] sm:$0xff]
      %v703 = vld [vmem:[%s2 + $0x70] sm:$0xff]
      %v704 = vld [vmem:[%s2 + $0x78] sm:$0xff]
      %vm705 = vcmask 64512
      %v707 = vsel %vm705, %v689, 0
      %v710 = vsel %vm705, %v690, 0
      %v713 = vsel %vm705, %v691, 0
      %v716 = vsel %vm705, %v692, 0
      %v719 = vsel %vm705, %v693, 0
      %v722 = vsel %vm705, %v694, 0
      %v725 = vsel %vm705, %v695, 0
      %v728 = vsel %vm705, %v696, 0
      %v731 = vsel %vm705, %v697, 0
      %v734 = vsel %vm705, %v698, 0
      %v737 = vsel %vm705, %v699, 0
      %v740 = vsel %vm705, %v700, 0
      %v743 = vsel %vm705, %v701, 0
      %v746 = vsel %vm705, %v702, 0
      %v749 = vsel %vm705, %v703, 0
      %v752 = vsel %vm705, %v704, 0
      %754 = vmatprep.subr.mxu0 0.0
      %755 = vmatpush1.msra.mxu0 0.0
      %756 = vmatprep.subr.mxu0 0.0
      %757 = vmatpush1.msra.mxu0 0.0
      %758 = vmatprep.subr.mxu0 0.0
      %759 = vmatpush1.msra.mxu0 0.0
      %760 = vmatprep.subr.mxu0 0.0
      %761 = vmatpush1.msra.mxu0 0.0
      %762 = vmatprep.subr.mxu0 0.0
      %763 = vmatpush1.msra.mxu0 0.0
      %764 = vmatprep.subr.mxu0 0.0
      %765 = vmatpush1.msra.mxu0 0.0
      %766 = vmatprep.subr.mxu0 0.0
      %767 = vmatpush1.msra.mxu0 0.0
      %768 = vmatprep.subr.mxu0 0.0
      %769 = vmatpush1.msra.mxu0 0.0
      %770 = vmatprep.subr.mxu0 0.0
      %771 = vmatpush1.msra.mxu0 0.0
      %772 = vmatprep.subr.mxu0 0.0
      %773 = vmatpush1.msra.mxu0 0.0
      %774 = vmatprep.subr.mxu0 0.0
      %775 = vmatpush1.msra.mxu0 0.0
      %776 = vmatprep.subr.mxu0 0.0
      %777 = vmatpush1.msra.mxu0 0.0
      %778 = vmatprep.subr.mxu0 0.0
      %779 = vmatpush1.msra.mxu0 0.0
      %780 = vmatprep.subr.mxu0 0.0
      %781 = vmatpush1.msra.mxu0 0.0
      %782 = vmatprep.subr.mxu0 0.0
      %783 = vmatpush1.msra.mxu0 0.0
      %784 = vmatprep.subr.mxu0 0.0
      %785 = vmatpush1.msra.mxu0 %v688
      %786 = vmatprep.subr.mxu0 0.0
      %787 = vmatpush2.msra.mxu0 0.0
      %788 = vmatprep.subr.mxu0 0.0
      %789 = vmatpush2.msra.mxu0 0.0
      %790 = vmatprep.subr.mxu0 0.0
      %791 = vmatpush2.msra.mxu0 0.0
      %792 = vmatprep.subr.mxu0 0.0
      %793 = vmatpush2.msra.mxu0 0.0
      %794 = vmatprep.subr.mxu0 0.0
      %795 = vmatpush2.msra.mxu0 0.0
      %796 = vmatprep.subr.mxu0 0.0
      %797 = vmatpush2.msra.mxu0 0.0
      %798 = vmatprep.subr.mxu0 0.0
      %799 = vmatpush2.msra.mxu0 0.0
      %800 = vmatprep.subr.mxu0 0.0
      %801 = vmatpush2.msra.mxu0 0.0
      %802 = vmatprep.subr.mxu0 0.0
      %803 = vmatpush2.msra.mxu0 0.0
      %804 = vmatprep.subr.mxu0 0.0
      %805 = vmatpush2.msra.mxu0 0.0
      %806 = vmatprep.subr.mxu0 0.0
      %807 = vmatpush2.msra.mxu0 0.0
      %808 = vmatprep.subr.mxu0 0.0
      %809 = vmatpush2.msra.mxu0 0.0
      %810 = vmatprep.subr.mxu0 0.0
      %811 = vmatpush2.msra.mxu0 0.0
      %812 = vmatprep.subr.mxu0 0.0
      %813 = vmatpush2.msra.mxu0 0.0
      %814 = vmatprep.subr.mxu0 0.0
      %815 = vmatpush2.msra.mxu0 0.0
      %816 = vmatprep.subr.mxu0 0.0
      %817 = vmatpush2.msra.mxu0 0.0
      %818 = vmatprep.mubr.f32.mxu0 0.0
      %819 = vmatmul.mubr.f32.gmra.mxu0 %v707
      %v820 = vpop.f32.mrf.mxu0
      %v821 = vadd.f32 0.0, %v820
      %v822 = vpop.f32.mrf.mxu0
      %823 = vmatprep.mubr.f32.mxu0 0.0
      %824 = vmatmul.mubr.f32.gmra.mxu0 %v710
      %v825 = vpop.f32.mrf.mxu0
      %v826 = vadd.f32 0.0, %v825
      %v827 = vpop.f32.mrf.mxu0
      %828 = vmatprep.mubr.f32.mxu0 0.0
      %829 = vmatmul.mubr.f32.gmra.mxu0 %v713
      %v830 = vpop.f32.mrf.mxu0
      %v831 = vadd.f32 0.0, %v830
      %v832 = vpop.f32.mrf.mxu0
      %833 = vmatprep.mubr.f32.mxu0 0.0
      %834 = vmatmul.mubr.f32.gmra.mxu0 %v716
      %v835 = vpop.f32.mrf.mxu0
      %v836 = vadd.f32 0.0, %v835
      %v837 = vpop.f32.mrf.mxu0
      %838 = vmatprep.mubr.f32.mxu0 0.0
      %839 = vmatmul.mubr.f32.gmra.mxu0 %v719
      %v840 = vpop.f32.mrf.mxu0
      %v841 = vadd.f32 0.0, %v840
      %v842 = vpop.f32.mrf.mxu0
      %843 = vmatprep.mubr.f32.mxu0 0.0
      %844 = vmatmul.mubr.f32.gmra.mxu0 %v722
      %v845 = vpop.f32.mrf.mxu0
      %v846 = vadd.f32 0.0, %v845
      %v847 = vpop.f32.mrf.mxu0
      %848 = vmatprep.mubr.f32.mxu0 0.0
      %849 = vmatmul.mubr.f32.gmra.mxu0 %v725
      %v850 = vpop.f32.mrf.mxu0
      %v851 = vadd.f32 0.0, %v850
      %v852 = vpop.f32.mrf.mxu0
      %853 = vmatprep.mubr.f32.mxu0 0.0
      %854 = vmatmul.mubr.f32.gmra.mxu0 %v728
      %v855 = vpop.f32.mrf.mxu0
      %v856 = vadd.f32 0.0, %v855
      %v857 = vpop.f32.mrf.mxu0
      %858 = vmatprep.mubr.f32.mxu0 0.0
      %859 = vmatmul.mubr.f32.gmra.mxu0 %v731
      %v860 = vpop.f32.mrf.mxu0
      %v861 = vadd.f32 0.0, %v860
      %v862 = vpop.f32.mrf.mxu0
      %863 = vmatprep.mubr.f32.mxu0 0.0
      %864 = vmatmul.mubr.f32.gmra.mxu0 %v734
      %v865 = vpop.f32.mrf.mxu0
      %v866 = vadd.f32 0.0, %v865
      %v867 = vpop.f32.mrf.mxu0
      %868 = vmatprep.mubr.f32.mxu0 0.0
      %869 = vmatmul.mubr.f32.gmra.mxu0 %v737
      %v870 = vpop.f32.mrf.mxu0
      %v871 = vadd.f32 0.0, %v870
      %v872 = vpop.f32.mrf.mxu0
      %873 = vmatprep.mubr.f32.mxu0 0.0
      %874 = vmatmul.mubr.f32.gmra.mxu0 %v740
      %v875 = vpop.f32.mrf.mxu0
      %v876 = vadd.f32 0.0, %v875
      %v877 = vpop.f32.mrf.mxu0
      %878 = vmatprep.mubr.f32.mxu0 0.0
      %879 = vmatmul.mubr.f32.gmra.mxu0 %v743
      %v880 = vpop.f32.mrf.mxu0
      %v881 = vadd.f32 0.0, %v880
      %v882 = vpop.f32.mrf.mxu0
      %883 = vmatprep.mubr.f32.mxu0 0.0
      %884 = vmatmul.mubr.f32.gmra.mxu0 %v746
      %v885 = vpop.f32.mrf.mxu0
      %v886 = vadd.f32 0.0, %v885
      %v887 = vpop.f32.mrf.mxu0
      %888 = vmatprep.mubr.f32.mxu0 0.0
      %889 = vmatmul.mubr.f32.gmra.mxu0 %v749
      %v890 = vpop.f32.mrf.mxu0
      %v891 = vadd.f32 0.0, %v890
      %v892 = vpop.f32.mrf.mxu0
      %893 = vmatprep.mubr.f32.mxu0 0.0
      %894 = vmatmul.mubr.f32.gmra.mxu0 %v752
      %v895 = vpop.f32.mrf.mxu0
      %v896 = vadd.f32 0.0, %v895
      %v897 = vpop.f32.mrf.mxu0
      %898 = vdwg.mxu0
      %v899 = vxor.u32 %v821, 2147483648
      %v900 = vxor.u32 %v826, 2147483648
      %v901 = vxor.u32 %v831, 2147483648
      %v902 = vxor.u32 %v836, 2147483648
      %v903 = vxor.u32 %v841, 2147483648
      %v904 = vxor.u32 %v846, 2147483648
      %v905 = vxor.u32 %v851, 2147483648
      %v906 = vxor.u32 %v856, 2147483648
      %v907 = vxor.u32 %v861, 2147483648
      %v908 = vxor.u32 %v866, 2147483648
      %v909 = vxor.u32 %v871, 2147483648
      %v910 = vxor.u32 %v876, 2147483648
      %v911 = vxor.u32 %v881, 2147483648
      %v912 = vxor.u32 %v886, 2147483648
      %v913 = vxor.u32 %v891, 2147483648
      %v914 = vxor.u32 %v896, 2147483648
      %v915 = vmul.f32 %v899, 1.442695
      %v916 = vpow.pop %v915
      %v917 = vmul.f32 %v900, 1.442695
      %v918 = vpow.pop %v917
      %v919 = vmul.f32 %v901, 1.442695
      %v920 = vpow.pop %v919
      %v921 = vmul.f32 %v902, 1.442695
      %v922 = vpow.pop %v921
      %v923 = vmul.f32 %v903, 1.442695
      %v924 = vpow.pop %v923
      %v925 = vmul.f32 %v904, 1.442695
      %v926 = vpow.pop %v925
      %v927 = vmul.f32 %v905, 1.442695
      %v928 = vpow.pop %v927
      %v929 = vmul.f32 %v906, 1.442695
      %v930 = vpow.pop %v929
      %v931 = vmul.f32 %v907, 1.442695
      %v932 = vpow.pop %v931
      %v933 = vmul.f32 %v908, 1.442695
      %v934 = vpow.pop %v933
      %v935 = vmul.f32 %v909, 1.442695
      %v936 = vpow.pop %v935
      %v937 = vmul.f32 %v910, 1.442695
      %v938 = vpow.pop %v937
      %v939 = vmul.f32 %v911, 1.442695
      %v940 = vpow.pop %v939
      %v941 = vmul.f32 %v912, 1.442695
      %v942 = vpow.pop %v941
      %v943 = vmul.f32 %v913, 1.442695
      %v944 = vpow.pop %v943
      %v945 = vmul.f32 %v914, 1.442695
      %v946 = vpow.pop %v945
      %v947 = vadd.f32 %v916, 1.0
      %v948 = vadd.f32 %v918, 1.0
      %v949 = vadd.f32 %v920, 1.0
      %v950 = vadd.f32 %v922, 1.0
      %v951 = vadd.f32 %v924, 1.0
      %v952 = vadd.f32 %v926, 1.0
      %v953 = vadd.f32 %v928, 1.0
      %v954 = vadd.f32 %v930, 1.0
      %v955 = vadd.f32 %v932, 1.0
      %v956 = vadd.f32 %v934, 1.0
      %v957 = vadd.f32 %v936, 1.0
      %v958 = vadd.f32 %v938, 1.0
      %v959 = vadd.f32 %v940, 1.0
      %v960 = vadd.f32 %v942, 1.0
      %v961 = vadd.f32 %v944, 1.0
      %v962 = vadd.f32 %v946, 1.0
      %v963 = vrcp.pop %v947
      %v964 = vmul.f32 1.0, %v963
      %v965 = vrcp.pop %v948
      %v966 = vmul.f32 1.0, %v965
      %v967 = vrcp.pop %v949
      %v968 = vmul.f32 1.0, %v967
      %v969 = vrcp.pop %v950
      %v970 = vmul.f32 1.0, %v969
      %v971 = vrcp.pop %v951
      %v972 = vmul.f32 1.0, %v971
      %v973 = vrcp.pop %v952
      %v974 = vmul.f32 1.0, %v973
      %v975 = vrcp.pop %v953
      %v976 = vmul.f32 1.0, %v975
      %v977 = vrcp.pop %v954
      %v978 = vmul.f32 1.0, %v977
      %v979 = vrcp.pop %v955
      %v980 = vmul.f32 1.0, %v979
      %v981 = vrcp.pop %v956
      %v982 = vmul.f32 1.0, %v981
      %v983 = vrcp.pop %v957
      %v984 = vmul.f32 1.0, %v983
      %v985 = vrcp.pop %v958
      %v986 = vmul.f32 1.0, %v985
      %v987 = vrcp.pop %v959
      %v988 = vmul.f32 1.0, %v987
      %v989 = vrcp.pop %v960
      %v990 = vmul.f32 1.0, %v989
      %v991 = vrcp.pop %v961
      %v992 = vmul.f32 1.0, %v991
      %v993 = vrcp.pop %v962
      %v994 = vmul.f32 1.0, %v993
      %996 = vset.pattern.permute.xlu0 0
      %997 = vperm.xlu0 %996, %v964
      %v998 = vpop.permute.xlu0 %997
      %1001 = vset.pattern.permute.xlu0 0
      %1002 = vperm.xlu0 %1001, %v966
      %v1003 = vpop.permute.xlu0 %1002
      %1006 = vset.pattern.permute.xlu0 0
      %1007 = vperm.xlu0 %1006, %v968
      %v1008 = vpop.permute.xlu0 %1007
      %1011 = vset.pattern.permute.xlu0 0
      %1012 = vperm.xlu0 %1011, %v970
      %v1013 = vpop.permute.xlu0 %1012
      %1016 = vset.pattern.permute.xlu0 0
      %1017 = vperm.xlu0 %1016, %v972
      %v1018 = vpop.permute.xlu0 %1017
      %1021 = vset.pattern.permute.xlu0 0
      %1022 = vperm.xlu0 %1021, %v974
      %v1023 = vpop.permute.xlu0 %1022
      %1026 = vset.pattern.permute.xlu0 0
      %1027 = vperm.xlu0 %1026, %v976
      %v1028 = vpop.permute.xlu0 %1027
      %1031 = vset.pattern.permute.xlu0 0
      %1032 = vperm.xlu0 %1031, %v978
      %v1033 = vpop.permute.xlu0 %1032
      %1036 = vset.pattern.permute.xlu0 0
      %1037 = vperm.xlu0 %1036, %v980
      %v1038 = vpop.permute.xlu0 %1037
      %1041 = vset.pattern.permute.xlu0 0
      %1042 = vperm.xlu0 %1041, %v982
      %v1043 = vpop.permute.xlu0 %1042
      %1046 = vset.pattern.permute.xlu0 0
      %1047 = vperm.xlu0 %1046, %v984
      %v1048 = vpop.permute.xlu0 %1047
      %1051 = vset.pattern.permute.xlu0 0
      %1052 = vperm.xlu0 %1051, %v986
      %v1053 = vpop.permute.xlu0 %1052
      %1056 = vset.pattern.permute.xlu0 0
      %1057 = vperm.xlu0 %1056, %v988
      %v1058 = vpop.permute.xlu0 %1057
      %1061 = vset.pattern.permute.xlu0 0
      %1062 = vperm.xlu0 %1061, %v990
      %v1063 = vpop.permute.xlu0 %1062
      %1066 = vset.pattern.permute.xlu0 0
      %1067 = vperm.xlu0 %1066, %v992
      %v1068 = vpop.permute.xlu0 %1067
      %1071 = vset.pattern.permute.xlu0 0
      %1072 = vperm.xlu0 %1071, %v994
      %v1073 = vpop.permute.xlu0 %1072
      %v1075 = vmul.f32 %v179, %v998
      %v1076 = vmul.f32 %v180, %v998
      %v1077 = vmul.f32 %v181, %v1003
      %v1078 = vmul.f32 %v182, %v1003
      %v1079 = vmul.f32 %v183, %v1008
      %v1080 = vmul.f32 %v184, %v1008
      %v1081 = vmul.f32 %v185, %v1013
      %v1082 = vmul.f32 %v186, %v1013
      %v1083 = vmul.f32 %v187, %v1018
      %v1084 = vmul.f32 %v188, %v1018
      %v1085 = vmul.f32 %v189, %v1023
      %v1086 = vmul.f32 %v190, %v1023
      %v1087 = vmul.f32 %v191, %v1028
      %v1088 = vmul.f32 %v192, %v1028
      %v1089 = vmul.f32 %v193, %v1033
      %v1090 = vmul.f32 %v194, %v1033
      %v1091 = vmul.f32 %v195, %v1038
      %v1092 = vmul.f32 %v196, %v1038
      %v1093 = vmul.f32 %v197, %v1043
      %v1094 = vmul.f32 %v198, %v1043
      %v1095 = vmul.f32 %v199, %v1048
      %v1096 = vmul.f32 %v200, %v1048
      %v1097 = vmul.f32 %v201, %v1053
      %v1098 = vmul.f32 %v202, %v1053
      %v1099 = vmul.f32 %v203, %v1058
      %v1100 = vmul.f32 %v204, %v1058
      %v1101 = vmul.f32 %v205, %v1063
      %v1102 = vmul.f32 %v206, %v1063
      %v1103 = vmul.f32 %v207, %v1068
      %v1104 = vmul.f32 %v208, %v1068
      %v1105 = vmul.f32 %v209, %v1073
      %v1106 = vmul.f32 %v210, %v1073
      %1107 = vst [vmem:[%s177] sm:$0xff] %v1075
      %1108 = vst [vmem:[%s177 + $0x8] sm:$0xff] %v1076
      %1109 = vst [vmem:[%s177 + $0x10] sm:$0xff] %v1077
      %1110 = vst [vmem:[%s177 + $0x18] sm:$0xff] %v1078
      %1111 = vst [vmem:[%s177 + $0x20] sm:$0xff] %v1079
      %1112 = vst [vmem:[%s177 + $0x28] sm:$0xff] %v1080
      %1113 = vst [vmem:[%s177 + $0x30] sm:$0xff] %v1081
      %1114 = vst [vmem:[%s177 + $0x38] sm:$0xff] %v1082
      %1115 = vst [vmem:[%s177 + $0x40] sm:$0xff] %v1083
      %1116 = vst [vmem:[%s177 + $0x48] sm:$0xff] %v1084
      %1117 = vst [vmem:[%s177 + $0x50] sm:$0xff] %v1085
      %1118 = vst [vmem:[%s177 + $0x58] sm:$0xff] %v1086
      %1119 = vst [vmem:[%s177 + $0x60] sm:$0xff] %v1087
      %1120 = vst [vmem:[%s177 + $0x68] sm:$0xff] %v1088
      %1121 = vst [vmem:[%s177 + $0x70] sm:$0xff] %v1089
      %1122 = vst [vmem:[%s177 + $0x78] sm:$0xff] %v1090
      %1123 = vst [vmem:[%s177 + $0x80] sm:$0xff] %v1091
      %1124 = vst [vmem:[%s177 + $0x88] sm:$0xff] %v1092
      %1125 = vst [vmem:[%s177 + $0x90] sm:$0xff] %v1093
      %1126 = vst [vmem:[%s177 + $0x98] sm:$0xff] %v1094
      %1127 = vst [vmem:[%s177 + $0xa0] sm:$0xff] %v1095
      %1128 = vst [vmem:[%s177 + $0xa8] sm:$0xff] %v1096
      %1129 = vst [vmem:[%s177 + $0xb0] sm:$0xff] %v1097
      %1130 = vst [vmem:[%s177 + $0xb8] sm:$0xff] %v1098
      %1131 = vst [vmem:[%s177 + $0xc0] sm:$0xff] %v1099
      %1132 = vst [vmem:[%s177 + $0xc8] sm:$0xff] %v1100
      %1133 = vst [vmem:[%s177 + $0xd0] sm:$0xff] %v1101
      %1134 = vst [vmem:[%s177 + $0xd8] sm:$0xff] %v1102
      %1135 = vst [vmem:[%s177 + $0xe0] sm:$0xff] %v1103
      %1136 = vst [vmem:[%s177 + $0xe8] sm:$0xff] %v1104
      %1137 = vst [vmem:[%s177 + $0xf0] sm:$0xff] %v1105
      %1138 = vst [vmem:[%s177 + $0xf8] sm:$0xff] %v1106
      %v1139 = vld [vmem:[%s275] sm:$0xff]
      %v1140 = vld [vmem:[%s275 + $0x8] sm:$0xff]
      %v1141 = vld [vmem:[%s275 + $0x10] sm:$0xff]
      %v1142 = vld [vmem:[%s275 + $0x18] sm:$0xff]
      %v1143 = vld [vmem:[%s275 + $0x20] sm:$0xff]
      %v1144 = vld [vmem:[%s275 + $0x28] sm:$0xff]
      %v1145 = vld [vmem:[%s275 + $0x30] sm:$0xff]
      %v1146 = vld [vmem:[%s275 + $0x38] sm:$0xff]
      %v1147 = vld [vmem:[%s275 + $0x40] sm:$0xff]
      %v1148 = vld [vmem:[%s275 + $0x48] sm:$0xff]
      %v1149 = vld [vmem:[%s275 + $0x50] sm:$0xff]
      %v1150 = vld [vmem:[%s275 + $0x58] sm:$0xff]
      %v1151 = vld [vmem:[%s275 + $0x60] sm:$0xff]
      %v1152 = vld [vmem:[%s275 + $0x68] sm:$0xff]
      %v1153 = vld [vmem:[%s275 + $0x70] sm:$0xff]
      %v1154 = vld [vmem:[%s275 + $0x78] sm:$0xff]
      %v1155 = vld [vmem:[%s275 + $0x80] sm:$0xff]
      %v1156 = vld [vmem:[%s275 + $0x88] sm:$0xff]
      %v1157 = vld [vmem:[%s275 + $0x90] sm:$0xff]
      %v1158 = vld [vmem:[%s275 + $0x98] sm:$0xff]
      %v1159 = vld [vmem:[%s275 + $0xa0] sm:$0xff]
      %v1160 = vld [vmem:[%s275 + $0xa8] sm:$0xff]
      %v1161 = vld [vmem:[%s275 + $0xb0] sm:$0xff]
      %v1162 = vld [vmem:[%s275 + $0xb8] sm:$0xff]
      %v1163 = vld [vmem:[%s275 + $0xc0] sm:$0xff]
      %v1164 = vld [vmem:[%s275 + $0xc8] sm:$0xff]
      %v1165 = vld [vmem:[%s275 + $0xd0] sm:$0xff]
      %v1166 = vld [vmem:[%s275 + $0xd8] sm:$0xff]
      %v1167 = vld [vmem:[%s275 + $0xe0] sm:$0xff]
      %v1168 = vld [vmem:[%s275 + $0xe8] sm:$0xff]
      %v1169 = vld [vmem:[%s275 + $0xf0] sm:$0xff]
      %v1170 = vld [vmem:[%s275 + $0xf8] sm:$0xff]
      %1171 = vset.pattern.permute.xlu0 1
      %1172 = vperm.xlu0 %1171, %v964
      %v1173 = vpop.permute.xlu0 %1172
      %1175 = vset.pattern.permute.xlu0 1
      %1176 = vperm.xlu0 %1175, %v966
      %v1177 = vpop.permute.xlu0 %1176
      %1179 = vset.pattern.permute.xlu0 1
      %1180 = vperm.xlu0 %1179, %v968
      %v1181 = vpop.permute.xlu0 %1180
      %1183 = vset.pattern.permute.xlu0 1
      %1184 = vperm.xlu0 %1183, %v970
      %v1185 = vpop.permute.xlu0 %1184
      %1187 = vset.pattern.permute.xlu0 1
      %1188 = vperm.xlu0 %1187, %v972
      %v1189 = vpop.permute.xlu0 %1188
      %1191 = vset.pattern.permute.xlu0 1
      %1192 = vperm.xlu0 %1191, %v974
      %v1193 = vpop.permute.xlu0 %1192
      %1195 = vset.pattern.permute.xlu0 1
      %1196 = vperm.xlu0 %1195, %v976
      %v1197 = vpop.permute.xlu0 %1196
      %1199 = vset.pattern.permute.xlu0 1
      %1200 = vperm.xlu0 %1199, %v978
      %v1201 = vpop.permute.xlu0 %1200
      %1203 = vset.pattern.permute.xlu0 1
      %1204 = vperm.xlu0 %1203, %v980
      %v1205 = vpop.permute.xlu0 %1204
      %1207 = vset.pattern.permute.xlu0 1
      %1208 = vperm.xlu0 %1207, %v982
      %v1209 = vpop.permute.xlu0 %1208
      %1211 = vset.pattern.permute.xlu0 1
      %1212 = vperm.xlu0 %1211, %v984
      %v1213 = vpop.permute.xlu0 %1212
      %1215 = vset.pattern.permute.xlu0 1
      %1216 = vperm.xlu0 %1215, %v986
      %v1217 = vpop.permute.xlu0 %1216
      %1219 = vset.pattern.permute.xlu0 1
      %1220 = vperm.xlu0 %1219, %v988
      %v1221 = vpop.permute.xlu0 %1220
      %1223 = vset.pattern.permute.xlu0 1
      %1224 = vperm.xlu0 %1223, %v990
      %v1225 = vpop.permute.xlu0 %1224
      %1227 = vset.pattern.permute.xlu0 1
      %1228 = vperm.xlu0 %1227, %v992
      %v1229 = vpop.permute.xlu0 %1228
      %1231 = vset.pattern.permute.xlu0 1
      %1232 = vperm.xlu0 %1231, %v994
      %v1233 = vpop.permute.xlu0 %1232
      %v1235 = vmul.f32 %v1139, %v1173
      %v1236 = vmul.f32 %v1140, %v1173
      %v1237 = vmul.f32 %v1141, %v1177
      %v1238 = vmul.f32 %v1142, %v1177
      %v1239 = vmul.f32 %v1143, %v1181
      %v1240 = vmul.f32 %v1144, %v1181
      %v1241 = vmul.f32 %v1145, %v1185
      %v1242 = vmul.f32 %v1146, %v1185
      %v1243 = vmul.f32 %v1147, %v1189
      %v1244 = vmul.f32 %v1148, %v1189
      %v1245 = vmul.f32 %v1149, %v1193
      %v1246 = vmul.f32 %v1150, %v1193
      %v1247 = vmul.f32 %v1151, %v1197
      %v1248 = vmul.f32 %v1152, %v1197
      %v1249 = vmul.f32 %v1153, %v1201
      %v1250 = vmul.f32 %v1154, %v1201
      %v1251 = vmul.f32 %v1155, %v1205
      %v1252 = vmul.f32 %v1156, %v1205
      %v1253 = vmul.f32 %v1157, %v1209
      %v1254 = vmul.f32 %v1158, %v1209
      %v1255 = vmul.f32 %v1159, %v1213
      %v1256 = vmul.f32 %v1160, %v1213
      %v1257 = vmul.f32 %v1161, %v1217
      %v1258 = vmul.f32 %v1162, %v1217
      %v1259 = vmul.f32 %v1163, %v1221
      %v1260 = vmul.f32 %v1164, %v1221
      %v1261 = vmul.f32 %v1165, %v1225
      %v1262 = vmul.f32 %v1166, %v1225
      %v1263 = vmul.f32 %v1167, %v1229
      %v1264 = vmul.f32 %v1168, %v1229
      %v1265 = vmul.f32 %v1169, %v1233
      %v1266 = vmul.f32 %v1170, %v1233
      %s1267 = scalar_lea.vmem %s177, 256
      %1268 = vst [vmem:[%s1267] sm:$0xff] %v1235
      %1269 = vst [vmem:[%s1267 + $0x8] sm:$0xff] %v1236
      %1270 = vst [vmem:[%s1267 + $0x10] sm:$0xff] %v1237
      %1271 = vst [vmem:[%s1267 + $0x18] sm:$0xff] %v1238
      %1272 = vst [vmem:[%s1267 + $0x20] sm:$0xff] %v1239
      %1273 = vst [vmem:[%s1267 + $0x28] sm:$0xff] %v1240
      %1274 = vst [vmem:[%s1267 + $0x30] sm:$0xff] %v1241
      %1275 = vst [vmem:[%s1267 + $0x38] sm:$0xff] %v1242
      %1276 = vst [vmem:[%s1267 + $0x40] sm:$0xff] %v1243
      %1277 = vst [vmem:[%s1267 + $0x48] sm:$0xff] %v1244
      %1278 = vst [vmem:[%s1267 + $0x50] sm:$0xff] %v1245
      %1279 = vst [vmem:[%s1267 + $0x58] sm:$0xff] %v1246
      %1280 = vst [vmem:[%s1267 + $0x60] sm:$0xff] %v1247
      %1281 = vst [vmem:[%s1267 + $0x68] sm:$0xff] %v1248
      %1282 = vst [vmem:[%s1267 + $0x70] sm:$0xff] %v1249
      %1283 = vst [vmem:[%s1267 + $0x78] sm:$0xff] %v1250
      %1284 = vst [vmem:[%s1267 + $0x80] sm:$0xff] %v1251
      %1285 = vst [vmem:[%s1267 + $0x88] sm:$0xff] %v1252
      %1286 = vst [vmem:[%s1267 + $0x90] sm:$0xff] %v1253
      %1287 = vst [vmem:[%s1267 + $0x98] sm:$0xff] %v1254
      %1288 = vst [vmem:[%s1267 + $0xa0] sm:$0xff] %v1255
      %1289 = vst [vmem:[%s1267 + $0xa8] sm:$0xff] %v1256
      %1290 = vst [vmem:[%s1267 + $0xb0] sm:$0xff] %v1257
      %1291 = vst [vmem:[%s1267 + $0xb8] sm:$0xff] %v1258
      %1292 = vst [vmem:[%s1267 + $0xc0] sm:$0xff] %v1259
      %1293 = vst [vmem:[%s1267 + $0xc8] sm:$0xff] %v1260
      %1294 = vst [vmem:[%s1267 + $0xd0] sm:$0xff] %v1261
      %1295 = vst [vmem:[%s1267 + $0xd8] sm:$0xff] %v1262
      %1296 = vst [vmem:[%s1267 + $0xe0] sm:$0xff] %v1263
      %1297 = vst [vmem:[%s1267 + $0xe8] sm:$0xff] %v1264
      %1298 = vst [vmem:[%s1267 + $0xf0] sm:$0xff] %v1265
      %1299 = vst [vmem:[%s1267 + $0xf8] sm:$0xff] %v1266
      %v1300 = vld [vmem:[%s372] sm:$0xff]
      %v1301 = vld [vmem:[%s372 + $0x8] sm:$0xff]
      %v1302 = vld [vmem:[%s372 + $0x10] sm:$0xff]
      %v1303 = vld [vmem:[%s372 + $0x18] sm:$0xff]
      %v1304 = vld [vmem:[%s372 + $0x20] sm:$0xff]
      %v1305 = vld [vmem:[%s372 + $0x28] sm:$0xff]
      %v1306 = vld [vmem:[%s372 + $0x30] sm:$0xff]
      %v1307 = vld [vmem:[%s372 + $0x38] sm:$0xff]
      %v1308 = vld [vmem:[%s372 + $0x40] sm:$0xff]
      %v1309 = vld [vmem:[%s372 + $0x48] sm:$0xff]
      %v1310 = vld [vmem:[%s372 + $0x50] sm:$0xff]
      %v1311 = vld [vmem:[%s372 + $0x58] sm:$0xff]
      %v1312 = vld [vmem:[%s372 + $0x60] sm:$0xff]
      %v1313 = vld [vmem:[%s372 + $0x68] sm:$0xff]
      %v1314 = vld [vmem:[%s372 + $0x70] sm:$0xff]
      %v1315 = vld [vmem:[%s372 + $0x78] sm:$0xff]
      %v1316 = vld [vmem:[%s372 + $0x80] sm:$0xff]
      %v1317 = vld [vmem:[%s372 + $0x88] sm:$0xff]
      %v1318 = vld [vmem:[%s372 + $0x90] sm:$0xff]
      %v1319 = vld [vmem:[%s372 + $0x98] sm:$0xff]
      %v1320 = vld [vmem:[%s372 + $0xa0] sm:$0xff]
      %v1321 = vld [vmem:[%s372 + $0xa8] sm:$0xff]
      %v1322 = vld [vmem:[%s372 + $0xb0] sm:$0xff]
      %v1323 = vld [vmem:[%s372 + $0xb8] sm:$0xff]
      %v1324 = vld [vmem:[%s372 + $0xc0] sm:$0xff]
      %v1325 = vld [vmem:[%s372 + $0xc8] sm:$0xff]
      %v1326 = vld [vmem:[%s372 + $0xd0] sm:$0xff]
      %v1327 = vld [vmem:[%s372 + $0xd8] sm:$0xff]
      %v1328 = vld [vmem:[%s372 + $0xe0] sm:$0xff]
      %v1329 = vld [vmem:[%s372 + $0xe8] sm:$0xff]
      %v1330 = vld [vmem:[%s372 + $0xf0] sm:$0xff]
      %v1331 = vld [vmem:[%s372 + $0xf8] sm:$0xff]
      %1332 = vset.pattern.permute.xlu0 2
      %1333 = vperm.xlu0 %1332, %v964
      %v1334 = vpop.permute.xlu0 %1333
      %1336 = vset.pattern.permute.xlu0 2
      %1337 = vperm.xlu0 %1336, %v966
      %v1338 = vpop.permute.xlu0 %1337
      %1340 = vset.pattern.permute.xlu0 2
      %1341 = vperm.xlu0 %1340, %v968
      %v1342 = vpop.permute.xlu0 %1341
      %1344 = vset.pattern.permute.xlu0 2
      %1345 = vperm.xlu0 %1344, %v970
      %v1346 = vpop.permute.xlu0 %1345
      %1348 = vset.pattern.permute.xlu0 2
      %1349 = vperm.xlu0 %1348, %v972
      %v1350 = vpop.permute.xlu0 %1349
      %1352 = vset.pattern.permute.xlu0 2
      %1353 = vperm.xlu0 %1352, %v974
      %v1354 = vpop.permute.xlu0 %1353
      %1356 = vset.pattern.permute.xlu0 2
      %1357 = vperm.xlu0 %1356, %v976
      %v1358 = vpop.permute.xlu0 %1357
      %1360 = vset.pattern.permute.xlu0 2
      %1361 = vperm.xlu0 %1360, %v978
      %v1362 = vpop.permute.xlu0 %1361
      %1364 = vset.pattern.permute.xlu0 2
      %1365 = vperm.xlu0 %1364, %v980
      %v1366 = vpop.permute.xlu0 %1365
      %1368 = vset.pattern.permute.xlu0 2
      %1369 = vperm.xlu0 %1368, %v982
      %v1370 = vpop.permute.xlu0 %1369
      %1372 = vset.pattern.permute.xlu0 2
      %1373 = vperm.xlu0 %1372, %v984
      %v1374 = vpop.permute.xlu0 %1373
      %1376 = vset.pattern.permute.xlu0 2
      %1377 = vperm.xlu0 %1376, %v986
      %v1378 = vpop.permute.xlu0 %1377
      %1380 = vset.pattern.permute.xlu0 2
      %1381 = vperm.xlu0 %1380, %v988
      %v1382 = vpop.permute.xlu0 %1381
      %1384 = vset.pattern.permute.xlu0 2
      %1385 = vperm.xlu0 %1384, %v990
      %v1386 = vpop.permute.xlu0 %1385
      %1388 = vset.pattern.permute.xlu0 2
      %1389 = vperm.xlu0 %1388, %v992
      %v1390 = vpop.permute.xlu0 %1389
      %1392 = vset.pattern.permute.xlu0 2
      %1393 = vperm.xlu0 %1392, %v994
      %v1394 = vpop.permute.xlu0 %1393
      %v1396 = vmul.f32 %v1300, %v1334
      %v1397 = vmul.f32 %v1301, %v1334
      %v1398 = vmul.f32 %v1302, %v1338
      %v1399 = vmul.f32 %v1303, %v1338
      %v1400 = vmul.f32 %v1304, %v1342
      %v1401 = vmul.f32 %v1305, %v1342
      %v1402 = vmul.f32 %v1306, %v1346
      %v1403 = vmul.f32 %v1307, %v1346
      %v1404 = vmul.f32 %v1308, %v1350
      %v1405 = vmul.f32 %v1309, %v1350
      %v1406 = vmul.f32 %v1310, %v1354
      %v1407 = vmul.f32 %v1311, %v1354
      %v1408 = vmul.f32 %v1312, %v1358
      %v1409 = vmul.f32 %v1313, %v1358
      %v1410 = vmul.f32 %v1314, %v1362
      %v1411 = vmul.f32 %v1315, %v1362
      %v1412 = vmul.f32 %v1316, %v1366
      %v1413 = vmul.f32 %v1317, %v1366
      %v1414 = vmul.f32 %v1318, %v1370
      %v1415 = vmul.f32 %v1319, %v1370
      %v1416 = vmul.f32 %v1320, %v1374
      %v1417 = vmul.f32 %v1321, %v1374
      %v1418 = vmul.f32 %v1322, %v1378
      %v1419 = vmul.f32 %v1323, %v1378
      %v1420 = vmul.f32 %v1324, %v1382
      %v1421 = vmul.f32 %v1325, %v1382
      %v1422 = vmul.f32 %v1326, %v1386
      %v1423 = vmul.f32 %v1327, %v1386
      %v1424 = vmul.f32 %v1328, %v1390
      %v1425 = vmul.f32 %v1329, %v1390
      %v1426 = vmul.f32 %v1330, %v1394
      %v1427 = vmul.f32 %v1331, %v1394
      %s1428 = scalar_lea.vmem %s177, 512
      %1429 = vst [vmem:[%s1428] sm:$0xff] %v1396
      %1430 = vst [vmem:[%s1428 + $0x8] sm:$0xff] %v1397
      %1431 = vst [vmem:[%s1428 + $0x10] sm:$0xff] %v1398
      %1432 = vst [vmem:[%s1428 + $0x18] sm:$0xff] %v1399
      %1433 = vst [vmem:[%s1428 + $0x20] sm:$0xff] %v1400
      %1434 = vst [vmem:[%s1428 + $0x28] sm:$0xff] %v1401
      %1435 = vst [vmem:[%s1428 + $0x30] sm:$0xff] %v1402
      %1436 = vst [vmem:[%s1428 + $0x38] sm:$0xff] %v1403
      %1437 = vst [vmem:[%s1428 + $0x40] sm:$0xff] %v1404
      %1438 = vst [vmem:[%s1428 + $0x48] sm:$0xff] %v1405
      %1439 = vst [vmem:[%s1428 + $0x50] sm:$0xff] %v1406
      %1440 = vst [vmem:[%s1428 + $0x58] sm:$0xff] %v1407
      %1441 = vst [vmem:[%s1428 + $0x60] sm:$0xff] %v1408
      %1442 = vst [vmem:[%s1428 + $0x68] sm:$0xff] %v1409
      %1443 = vst [vmem:[%s1428 + $0x70] sm:$0xff] %v1410
      %1444 = vst [vmem:[%s1428 + $0x78] sm:$0xff] %v1411
      %1445 = vst [vmem:[%s1428 + $0x80] sm:$0xff] %v1412
      %1446 = vst [vmem:[%s1428 + $0x88] sm:$0xff] %v1413
      %1447 = vst [vmem:[%s1428 + $0x90] sm:$0xff] %v1414
      %1448 = vst [vmem:[%s1428 + $0x98] sm:$0xff] %v1415
      %1449 = vst [vmem:[%s1428 + $0xa0] sm:$0xff] %v1416
      %1450 = vst [vmem:[%s1428 + $0xa8] sm:$0xff] %v1417
      %1451 = vst [vmem:[%s1428 + $0xb0] sm:$0xff] %v1418
      %1452 = vst [vmem:[%s1428 + $0xb8] sm:$0xff] %v1419
      %1453 = vst [vmem:[%s1428 + $0xc0] sm:$0xff] %v1420
      %1454 = vst [vmem:[%s1428 + $0xc8] sm:$0xff] %v1421
      %1455 = vst [vmem:[%s1428 + $0xd0] sm:$0xff] %v1422
      %1456 = vst [vmem:[%s1428 + $0xd8] sm:$0xff] %v1423
      %1457 = vst [vmem:[%s1428 + $0xe0] sm:$0xff] %v1424
      %1458 = vst [vmem:[%s1428 + $0xe8] sm:$0xff] %v1425
      %1459 = vst [vmem:[%s1428 + $0xf0] sm:$0xff] %v1426
      %1460 = vst [vmem:[%s1428 + $0xf8] sm:$0xff] %v1427
      %v1461 = vld [vmem:[%s469] sm:$0xff]
      %v1462 = vld [vmem:[%s469 + $0x8] sm:$0xff]
      %v1463 = vld [vmem:[%s469 + $0x10] sm:$0xff]
      %v1464 = vld [vmem:[%s469 + $0x18] sm:$0xff]
      %v1465 = vld [vmem:[%s469 + $0x20] sm:$0xff]
      %v1466 = vld [vmem:[%s469 + $0x28] sm:$0xff]
      %v1467 = vld [vmem:[%s469 + $0x30] sm:$0xff]
      %v1468 = vld [vmem:[%s469 + $0x38] sm:$0xff]
      %v1469 = vld [vmem:[%s469 + $0x40] sm:$0xff]
      %v1470 = vld [vmem:[%s469 + $0x48] sm:$0xff]
      %v1471 = vld [vmem:[%s469 + $0x50] sm:$0xff]
      %v1472 = vld [vmem:[%s469 + $0x58] sm:$0xff]
      %v1473 = vld [vmem:[%s469 + $0x60] sm:$0xff]
      %v1474 = vld [vmem:[%s469 + $0x68] sm:$0xff]
      %v1475 = vld [vmem:[%s469 + $0x70] sm:$0xff]
      %v1476 = vld [vmem:[%s469 + $0x78] sm:$0xff]
      %v1477 = vld [vmem:[%s469 + $0x80] sm:$0xff]
      %v1478 = vld [vmem:[%s469 + $0x88] sm:$0xff]
      %v1479 = vld [vmem:[%s469 + $0x90] sm:$0xff]
      %v1480 = vld [vmem:[%s469 + $0x98] sm:$0xff]
      %v1481 = vld [vmem:[%s469 + $0xa0] sm:$0xff]
      %v1482 = vld [vmem:[%s469 + $0xa8] sm:$0xff]
      %v1483 = vld [vmem:[%s469 + $0xb0] sm:$0xff]
      %v1484 = vld [vmem:[%s469 + $0xb8] sm:$0xff]
      %v1485 = vld [vmem:[%s469 + $0xc0] sm:$0xff]
      %v1486 = vld [vmem:[%s469 + $0xc8] sm:$0xff]
      %v1487 = vld [vmem:[%s469 + $0xd0] sm:$0xff]
      %v1488 = vld [vmem:[%s469 + $0xd8] sm:$0xff]
      %v1489 = vld [vmem:[%s469 + $0xe0] sm:$0xff]
      %v1490 = vld [vmem:[%s469 + $0xe8] sm:$0xff]
      %v1491 = vld [vmem:[%s469 + $0xf0] sm:$0xff]
      %v1492 = vld [vmem:[%s469 + $0xf8] sm:$0xff]
      %1493 = vset.pattern.permute.xlu0 3
      %1494 = vperm.xlu0 %1493, %v964
      %v1495 = vpop.permute.xlu0 %1494
      %1497 = vset.pattern.permute.xlu0 3
      %1498 = vperm.xlu0 %1497, %v966
      %v1499 = vpop.permute.xlu0 %1498
      %1501 = vset.pattern.permute.xlu0 3
      %1502 = vperm.xlu0 %1501, %v968
      %v1503 = vpop.permute.xlu0 %1502
      %1505 = vset.pattern.permute.xlu0 3
      %1506 = vperm.xlu0 %1505, %v970
      %v1507 = vpop.permute.xlu0 %1506
      %1509 = vset.pattern.permute.xlu0 3
      %1510 = vperm.xlu0 %1509, %v972
      %v1511 = vpop.permute.xlu0 %1510
      %1513 = vset.pattern.permute.xlu0 3
      %1514 = vperm.xlu0 %1513, %v974
      %v1515 = vpop.permute.xlu0 %1514
      %1517 = vset.pattern.permute.xlu0 3
      %1518 = vperm.xlu0 %1517, %v976
      %v1519 = vpop.permute.xlu0 %1518
      %1521 = vset.pattern.permute.xlu0 3
      %1522 = vperm.xlu0 %1521, %v978
      %v1523 = vpop.permute.xlu0 %1522
      %1525 = vset.pattern.permute.xlu0 3
      %1526 = vperm.xlu0 %1525, %v980
      %v1527 = vpop.permute.xlu0 %1526
      %1529 = vset.pattern.permute.xlu0 3
      %1530 = vperm.xlu0 %1529, %v982
      %v1531 = vpop.permute.xlu0 %1530
      %1533 = vset.pattern.permute.xlu0 3
      %1534 = vperm.xlu0 %1533, %v984
      %v1535 = vpop.permute.xlu0 %1534
      %1537 = vset.pattern.permute.xlu0 3
      %1538 = vperm.xlu0 %1537, %v986
      %v1539 = vpop.permute.xlu0 %1538
      %1541 = vset.pattern.permute.xlu0 3
      %1542 = vperm.xlu0 %1541, %v988
      %v1543 = vpop.permute.xlu0 %1542
      %1545 = vset.pattern.permute.xlu0 3
      %1546 = vperm.xlu0 %1545, %v990
      %v1547 = vpop.permute.xlu0 %1546
      %1549 = vset.pattern.permute.xlu0 3
      %1550 = vperm.xlu0 %1549, %v992
      %v1551 = vpop.permute.xlu0 %1550
      %1553 = vset.pattern.permute.xlu0 3
      %1554 = vperm.xlu0 %1553, %v994
      %v1555 = vpop.permute.xlu0 %1554
      %v1557 = vmul.f32 %v1461, %v1495
      %v1558 = vmul.f32 %v1462, %v1495
      %v1559 = vmul.f32 %v1463, %v1499
      %v1560 = vmul.f32 %v1464, %v1499
      %v1561 = vmul.f32 %v1465, %v1503
      %v1562 = vmul.f32 %v1466, %v1503
      %v1563 = vmul.f32 %v1467, %v1507
      %v1564 = vmul.f32 %v1468, %v1507
      %v1565 = vmul.f32 %v1469, %v1511
      %v1566 = vmul.f32 %v1470, %v1511
      %v1567 = vmul.f32 %v1471, %v1515
      %v1568 = vmul.f32 %v1472, %v1515
      %v1569 = vmul.f32 %v1473, %v1519
      %v1570 = vmul.f32 %v1474, %v1519
      %v1571 = vmul.f32 %v1475, %v1523
      %v1572 = vmul.f32 %v1476, %v1523
      %v1573 = vmul.f32 %v1477, %v1527
      %v1574 = vmul.f32 %v1478, %v1527
      %v1575 = vmul.f32 %v1479, %v1531
      %v1576 = vmul.f32 %v1480, %v1531
      %v1577 = vmul.f32 %v1481, %v1535
      %v1578 = vmul.f32 %v1482, %v1535
      %v1579 = vmul.f32 %v1483, %v1539
      %v1580 = vmul.f32 %v1484, %v1539
      %v1581 = vmul.f32 %v1485, %v1543
      %v1582 = vmul.f32 %v1486, %v1543
      %v1583 = vmul.f32 %v1487, %v1547
      %v1584 = vmul.f32 %v1488, %v1547
      %v1585 = vmul.f32 %v1489, %v1551
      %v1586 = vmul.f32 %v1490, %v1551
      %v1587 = vmul.f32 %v1491, %v1555
      %v1588 = vmul.f32 %v1492, %v1555
      %s1589 = scalar_lea.vmem %s177, 768
      %1590 = vst [vmem:[%s1589] sm:$0xff] %v1557
      %1591 = vst [vmem:[%s1589 + $0x8] sm:$0xff] %v1558
      %1592 = vst [vmem:[%s1589 + $0x10] sm:$0xff] %v1559
      %1593 = vst [vmem:[%s1589 + $0x18] sm:$0xff] %v1560
      %1594 = vst [vmem:[%s1589 + $0x20] sm:$0xff] %v1561
      %1595 = vst [vmem:[%s1589 + $0x28] sm:$0xff] %v1562
      %1596 = vst [vmem:[%s1589 + $0x30] sm:$0xff] %v1563
      %1597 = vst [vmem:[%s1589 + $0x38] sm:$0xff] %v1564
      %1598 = vst [vmem:[%s1589 + $0x40] sm:$0xff] %v1565
      %1599 = vst [vmem:[%s1589 + $0x48] sm:$0xff] %v1566
      %1600 = vst [vmem:[%s1589 + $0x50] sm:$0xff] %v1567
      %1601 = vst [vmem:[%s1589 + $0x58] sm:$0xff] %v1568
      %1602 = vst [vmem:[%s1589 + $0x60] sm:$0xff] %v1569
      %1603 = vst [vmem:[%s1589 + $0x68] sm:$0xff] %v1570
      %1604 = vst [vmem:[%s1589 + $0x70] sm:$0xff] %v1571
      %1605 = vst [vmem:[%s1589 + $0x78] sm:$0xff] %v1572
      %1606 = vst [vmem:[%s1589 + $0x80] sm:$0xff] %v1573
      %1607 = vst [vmem:[%s1589 + $0x88] sm:$0xff] %v1574
      %1608 = vst [vmem:[%s1589 + $0x90] sm:$0xff] %v1575
      %1609 = vst [vmem:[%s1589 + $0x98] sm:$0xff] %v1576
      %1610 = vst [vmem:[%s1589 + $0xa0] sm:$0xff] %v1577
      %1611 = vst [vmem:[%s1589 + $0xa8] sm:$0xff] %v1578
      %1612 = vst [vmem:[%s1589 + $0xb0] sm:$0xff] %v1579
      %1613 = vst [vmem:[%s1589 + $0xb8] sm:$0xff] %v1580
      %1614 = vst [vmem:[%s1589 + $0xc0] sm:$0xff] %v1581
      %1615 = vst [vmem:[%s1589 + $0xc8] sm:$0xff] %v1582
      %1616 = vst [vmem:[%s1589 + $0xd0] sm:$0xff] %v1583
      %1617 = vst [vmem:[%s1589 + $0xd8] sm:$0xff] %v1584
      %1618 = vst [vmem:[%s1589 + $0xe0] sm:$0xff] %v1585
      %1619 = vst [vmem:[%s1589 + $0xe8] sm:$0xff] %v1586
      %1620 = vst [vmem:[%s1589 + $0xf0] sm:$0xff] %v1587
      %1621 = vst [vmem:[%s1589 + $0xf8] sm:$0xff] %v1588
      %s1622 = smul.u32 4, %s14
      %p1623 = scmp.lt.s32.totalorder %s1622, 7
      %s1624 = scalar_select %p1623, %s1622, 7
      %s1625 = smul.addr %s1624, 32
      %s1626 = smul.addr %s1625, 8
      %s1627 = scalar_lea.vmem %s3, %s1626
      // Predicated region
      $region33: #{se_forward.1} parent=31 // pred_check
        %p1628 = pneg %p100
      $region34: #{se_forward.1} parent=31 // pred_check_branch
        %1630 = sbr.rel (%p1628) target = $region36
      $region35: #{se_forward.1} parent=31 // pred_region
        %s1631 = smul.u32 4, %s14
      $region36: #{se_forward.1} parent=31 // pred_fallthru
        _
    $region32: #{se_forward.1} parent=5 // pred_fallthru
      _
    %p1632 = scmp.le.s32.totalorder 2, %s9
    // Predicated region
    $region37: #{se_forward.1} parent=5 // pred_check
      %p1633 = pneg %p1632
    $region38: #{se_forward.1} parent=5 // pred_check_branch
      %1635 = sbr.rel (%p1633) target = $region40
    $region39: #{se_forward.1} parent=5 // pred_region
      %s1636 = ssub.s32 %s9, 2
      // Predicated region
      $region41: #{se_forward.1} parent=39 // pred_check
        %p1637 = pneg %p106
      $region42: #{se_forward.1} parent=39 // pred_check_branch
        %1639 = sbr.rel (%p1637) target = $region44
      $region43: #{se_forward.1} parent=39 // pred_region
        %s1640 = smul.u32 4, %s15
        %p1641 = scmp.lt.s32.totalorder %s1640, 7
        %s1642 = scalar_select %p1641, %s1640, 7
        %s1643 = smul.addr %s1642, 32
        %s1644 = smul.addr %s1643, 8
        %s1645 = scalar_lea.vmem %s3, %s1644
      $region44: #{se_forward.1} parent=39 // pred_fallthru
        _
    $region40: #{se_forward.1} parent=5 // pred_fallthru
      _
  $region6: #{se_forward.1} parent=0 // loop_footer
    %s13 = sadd.s32 1, %s9
  $region7: #{se_forward.1} parent=0 // loop_footer_branch
    %8 = sbr.rel target = $region3
  $region8: #{se_forward.1} parent=0 // loop_exit
    _

</llo_original>
